<compile_context>
chip_gen: v6e
topology: v6e:2x2x1
jax: 0.10.0
libtpu: 0.0.40
codegen_flags: <defaults>
</compile_context>

<pallas_src>
import math
import numpy as np
import jax
import jax.numpy as jnp
from jax import lax
from jax.experimental import pallas as pl
from jax.experimental.pallas import tpu as pltpu

LN_EPS = 0.1                       # Encoder default eps in the source module
LOG_2PI = math.log(2.0 * math.pi)
MIXTURE_WEIGHTS = (3.0 / 20.0, 3.0 / 4.0, 1.0 / 10.0)
LOG_W0, LOG_W1, LOG_W2 = (math.log(w) for w in MIXTURE_WEIGHTS)
LOGVAR_UNIFORM = 10.0
LANE = 128


# ------------------------------- kernel ------------------------------------
def composite_prior_kernel(
    x_ref, z_ref,
    w1_ref, w2_ref, w3_ref, w4_ref, w5_ref, wmulv_ref,
    vec_ref,            # (15, H) f32: [b1,g1,t1, b2,g2,t2, ..., b5,g5,t5]
    bmulv_ref,          # (1, 2*Lp) f32: [b_mu | b_logvar] (zero-padded)
    out_ref,            # (block_b, Lp) f32, lane-dense
    acc_ref,            # (block_b, H)  f32 scratch: layer-1 matmul accumulator
    ss_ref,             # (block_b, 1)  f32 scratch: row sum of squares of x
):
    k = pl.program_id(1)

    @pl.when(k == 0)
    def _init():
        acc_ref[...] = jnp.zeros_like(acc_ref)
        ss_ref[...] = jnp.zeros_like(ss_ref)

    # ---- K-blocked first matmul + row sum-of-squares (streams w1) ----------
    x = x_ref[...]
    xf = x.astype(jnp.float32)
    ss_ref[...] += jnp.sum(xf * xf, axis=-1, keepdims=True)
    acc_ref[...] += jnp.dot(x.astype(jnp.bfloat16), w1_ref[...],
                            preferred_element_type=jnp.float32)

    @pl.when(k == pl.num_programs(1) - 1)
    def _epilogue():
        z = z_ref[...].astype(jnp.float32)

        def pvec(j):
            return (vec_ref[pl.ds(3 * j + 0, 1), :],    # bias   (1, H)
                    vec_ref[pl.ds(3 * j + 1, 1), :],    # gamma  (1, H)
                    vec_ref[pl.ds(3 * j + 2, 1), :])    # beta   (1, H)

        def dense(h, w_ref, b):
            # bf16 MXU operands, f32 accumulate; bias add in f32.
            return jnp.dot(h.astype(jnp.bfloat16), w_ref[...],
                           preferred_element_type=jnp.float32) + b

        def swish(v):
            return v * jax.nn.sigmoid(v)

        def layernorm(v, g, t):
            # One-pass variance (E[v^2] - E[v]^2): numerically safe at
            # eps=0.1, saves a full centered-square VPU pass (v5e VALU relief).
            mean = jnp.mean(v, axis=-1, keepdims=True)
            var = jnp.mean(v * v, axis=-1, keepdims=True) - mean * mean
            return (v - mean) * lax.rsqrt(var + LN_EPS) * g + t

        # L2 normalization applied to the f32 accumulator (exact by linearity;
        # bias added after the scaling).  1e-12 guards all-zero rows.
        inv_norm = lax.rsqrt(ss_ref[...] + 1e-12)

        b1, g1, t1 = pvec(0)
        h1 = layernorm(swish(acc_ref[...] * inv_norm + b1), g1, t1)
        s = h1
        b2, g2, t2 = pvec(1)
        h2 = layernorm(swish(dense(h1, w2_ref, b2) + s), g2, t2)
        s = s + h2
        b3, g3, t3 = pvec(2)
        h3 = layernorm(swish(dense(h2, w3_ref, b3) + s), g3, t3)
        s = s + h3
        b4, g4, t4 = pvec(3)
        h4 = layernorm(swish(dense(h3, w4_ref, b4) + s), g4, t4)
        s = s + h4
        b5, g5, t5 = pvec(4)
        h5 = layernorm(swish(dense(h4, w5_ref, b5) + s), g5, t5)

        # Fused, lane-padded mu/logvar projection: (B, H) @ (H, 2*Lp); split
        # lands on a 128-lane boundary -> no cross-lane shuffles.
        mulv = dense(h5, wmulv_ref, bmulv_ref[...])
        lp = z.shape[-1]
        post_mu = mulv[:, :lp]
        post_logvar = mulv[:, lp:]

        # ---- Composite prior: 3-Gaussian mixture, logsumexp over mixture ---
        z2 = z * z
        g_stnd = -0.5 * (LOG_2PI + z2) + LOG_W0                         # mu=0, logvar=0
        diff = z - post_mu
        g_post = -0.5 * (post_logvar + LOG_2PI
                         + diff * diff * jnp.exp(-post_logvar)) + LOG_W1
        g_unif = -0.5 * (LOGVAR_UNIFORM + LOG_2PI
                         + z2 * math.exp(-LOGVAR_UNIFORM)) + LOG_W2     # logvar=10

        m = jnp.maximum(jnp.maximum(g_stnd, g_post), g_unif)
        out = m + jnp.log(jnp.exp(g_stnd - m) + jnp.exp(g_post - m)
                          + jnp.exp(g_unif - m))
        out_ref[...] = out.astype(out_ref.dtype)


# --------------------------- tiling heuristics ------------------------------
def _pick_block_b(batch, target=512):
    """Largest 8-aligned divisor of `batch` up to `target`; prefers >=2 grid
    steps (v7x has 2 TensorCores) when an aligned tile of >=8 rows exists."""
    divisors = [d for d in range(1, batch + 1)
                if batch % d == 0 and (d % 8 == 0 or d == batch)]
    fits = [d for d in divisors if d <= target] or [min(divisors)]
    block = max(fits)
    if batch // block == 1:
        multi = [d for d in fits if batch // d >= 2 and d >= 8]
        if multi:
            block = max(multi)
    return block


def _pick_block_k(k_dim, target=512):
    """Largest 128-aligned divisor of input_dim up to `target` (w1 streaming
    chunk); falls back to the full dim when it is not 128-aligned."""
    if k_dim % LANE == 0:
        for cand in range(min(k_dim, target), 0, -LANE):
            if k_dim % cand == 0:
                return cand
    return k_dim


# --------------------- one-time parameter packing ---------------------------
def pack_params(params):
    """Hoists all per-call weight preprocessing out of the forward path (the
    prior is frozen): bf16 weight casts, fused + lane-padded mu/logvar
    projection, and the 15 per-layer bias/gamma/beta vectors packed into one
    (15, H) array (1 DMA instead of 15, no one-tile-per-(1,128) waste)."""
    (w1, b1, g1, t1, w2, b2, g2, t2, w3, b3, g3, t3,
     w4, b4, g4, t4, w5, b5, g5, t5, wmu, bmu, wlv, blv) = params

    input_dim, hidden = w1.shape
    latent = wmu.shape[1]
    latent_pad = ((latent + LANE - 1) // LANE) * LANE
    pad = latent_pad - latent

    def pad_cols(a):
        return jnp.pad(a, ((0, 0), (0, pad))) if pad else a

    w_mulv = jnp.concatenate([pad_cols(wmu), pad_cols(wlv)],
                             axis=1).astype(jnp.bfloat16)
    b_mulv = jnp.concatenate([pad_cols(bmu), pad_cols(blv)],
                             axis=1).astype(jnp.float32)
    vec = jnp.concatenate([b1, g1, t1, b2, g2, t2, b3, g3, t3,
                           b4, g4, t4, b5, g5, t5], axis=0).astype(jnp.float32)
    ws = tuple(w.astype(jnp.bfloat16) for w in (w1, w2, w3, w4, w5))
    return dict(ws=ws, w_mulv=w_mulv, vec=vec, b_mulv=b_mulv,
                input_dim=input_dim, H=hidden, L=latent, Lp=latent_pad)


# -------------------------------- wrapper -----------------------------------
def composite_prior(x, z, packed, *, block_b=None, block_k=None):
    """x may be f32 or bf16 (at production input_dim pass bf16 to halve the
    dominant HBM stream); z is f32 (B, L); `packed` comes from pack_params."""
    B, input_dim = x.shape
    H, L, Lp = packed["H"], packed["L"], packed["Lp"]
    assert input_dim == packed["input_dim"]
    assert z.shape == (B, L)

    if block_b is None:
        block_b = _pick_block_b(B)
    assert B % block_b == 0, "block_b must divide the batch"
    if block_k is None:
        block_k = _pick_block_k(input_dim)
    assert input_dim % block_k == 0, "block_k must divide input_dim"
    grid = (B // block_b, input_dim // block_k)

    z_in = jnp.pad(z, ((0, 0), (0, Lp - L))) if Lp != L else z
    ws, w_mulv = packed["ws"], packed["w_mulv"]
    vec, b_mulv = packed["vec"], packed["b_mulv"]

    def resident(shape):
        # Fetched once, held in VMEM for the whole grid: constant block index
        # + single buffer (no double-buffer VMEM waste for static weights).
        return pl.BlockSpec(shape, lambda i, k: (0, 0),
                            pipeline_mode=pl.Buffered(1))

    in_specs = [
        pl.BlockSpec((block_b, block_k), lambda i, k: (i, k)),   # x (streams over K)
        pl.BlockSpec((block_b, Lp), lambda i, k: (i, 0)),        # z
        pl.BlockSpec((block_k, H), lambda i, k: (k, 0)),         # w1 (streams over K)
        resident((H, H)),                                        # w2
        resident((H, H)),                                        # w3
        resident((H, H)),                                        # w4
        resident((H, H)),                                        # w5
        resident((H, 2 * Lp)),                                   # fused mu/logvar weight
        resident((15, H)),                                       # packed bias/gamma/beta
        resident((1, 2 * Lp)),                                   # fused mu/logvar bias
    ]
    out_specs = pl.BlockSpec((block_b, Lp), lambda i, k: (i, 0))

    # Explicit VMEM budget: computed footprint + 50% headroom, clamped so it
    # is valid on v7x (64 MiB) and never below the smallest default (16 MiB).
    x_item = x.dtype.itemsize
    footprint = (
        2 * block_k * H * 2                      # w1 tile (double-buffered, bf16)
        + (4 * H * H + H * 2 * Lp) * 2           # resident bf16 weights (single buffer)
        + (16 * H + 8 * 2 * Lp) * 4              # packed small vectors (padded)
        + 2 * block_b * block_k * x_item         # x tile (double-buffered)
        + 4 * block_b * Lp * 4                   # z + out tiles (double-buffered)
        + block_b * (H + LANE) * 4               # acc + ss scratch
        + 10 * block_b * max(H, 2 * Lp) * 4      # live f32 temporaries in the body
    )
    vmem_limit = int(min(64 * 2 ** 20,
                         max(footprint * 3 // 2 + (2 << 20), 16 * 2 ** 20)))

    flops = 2 * B * (input_dim * H + 4 * H * H + H * 2 * Lp)
    transcendentals = B * (15 * H + 4 * Lp + 8)          # advisory only
    bytes_accessed = (x.size * x_item + (z_in.size + B * Lp) * 4
                      + (sum(w.size for w in ws) + w_mulv.size) * 2
                      + (vec.size + b_mulv.size) * 4)

    out_full = pl.pallas_call(
        composite_prior_kernel,
        out_shape=jax.ShapeDtypeStruct((B, Lp), jnp.float32),
        grid=grid,
        in_specs=in_specs,
        out_specs=out_specs,
        scratch_shapes=[pltpu.VMEM((block_b, H), jnp.float32),   # layer-1 accumulator
                        pltpu.VMEM((block_b, 1), jnp.float32)],  # row sum-of-squares
        compiler_params=pltpu.CompilerParams(
            dimension_semantics=("parallel", "arbitrary"),
            vmem_limit_bytes=vmem_limit),
        cost_estimate=pl.CostEstimate(flops=int(flops),
                                      transcendentals=int(transcendentals),
                                      bytes_accessed=int(bytes_accessed)),
    )(x, z_in, *ws, w_mulv, vec, b_mulv)

    return out_full[:, :L] if Lp != L else out_full


# ------------------------- parameter construction ---------------------------
def make_params(key, input_dim, hidden_dim, latent_dim):
    ks = jax.random.split(key, 16)

    def lin(k, fan_in, fan_out):
        kw, kb = jax.random.split(k)
        w = jax.random.normal(kw, (fan_in, fan_out), jnp.float32) / np.sqrt(fan_in)
        b = jax.random.normal(kb, (1, fan_out), jnp.float32) * 0.01
        return w, b

    params = []
    w, b = lin(ks[0], input_dim, hidden_dim)
    params += [w, b, jnp.ones((1, hidden_dim), jnp.float32),
               jnp.zeros((1, hidden_dim), jnp.float32)]
    for i in range(1, 5):
        w, b = lin(ks[i], hidden_dim, hidden_dim)
        params += [w, b, jnp.ones((1, hidden_dim), jnp.float32),
                   jnp.zeros((1, hidden_dim), jnp.float32)]
    wmu, bmu = lin(ks[5], hidden_dim, latent_dim)
    wlv, blv = lin(ks[6], hidden_dim, latent_dim)
    params += [wmu, bmu, wlv, blv]
    return params


# ----------------------------- pure-JAX reference ---------------------------
def reference(x, z, params):
    """Mirrors CompositePrior.forward.  Two documented, numerics-only
    deviations from the pure-f32 PyTorch module (so kernel-vs-reference
    differences isolate implementation bugs rather than bf16 rounding
    placement):
      * matmul operands are bf16 with f32 accumulation, matching the
        bf16-weight kernel;
      * the L2 row normalization is applied to the f32 result of the first
        matmul instead of to x - mathematically identical by linearity
        ((x/||x||) @ W == (x @ W)/||x||, bias added after scaling) and the
        formulation the kernel needs to stream w1 over input_dim blocks."""
    (w1, b1, g1, t1, w2, b2, g2, t2, w3, b3, g3, t3,
     w4, b4, g4, t4, w5, b5, g5, t5, wmu, bmu, wlv, blv) = params

    def dense(h, w, b):
        return jnp.dot(h.astype(jnp.bfloat16), w.astype(jnp.bfloat16),
                       preferred_element_type=jnp.float32) + b

    def swish(v):
        return v * jax.nn.sigmoid(v)

    def ln(v, g, t):
        mean = jnp.mean(v, -1, keepdims=True)
        var = jnp.mean((v - mean) ** 2, -1, keepdims=True)
        return (v - mean) / jnp.sqrt(var + LN_EPS) * g + t

    inv_norm = 1.0 / jnp.sqrt(jnp.sum(x * x, -1, keepdims=True))
    pre1 = jnp.dot(x.astype(jnp.bfloat16), w1.astype(jnp.bfloat16),
                   preferred_element_type=jnp.float32) * inv_norm + b1
    h1 = ln(swish(pre1), g1, t1)
    h2 = ln(swish(dense(h1, w2, b2) + h1), g2, t2)
    h3 = ln(swish(dense(h2, w3, b3) + h1 + h2), g3, t3)
    h4 = ln(swish(dense(h3, w4, b4) + h1 + h2 + h3), g4, t4)
    h5 = ln(swish(dense(h4, w5, b5) + h1 + h2 + h3 + h4), g5, t5)
    mu, lv = dense(h5, wmu, bmu), dense(h5, wlv, blv)

    def lnp(zz, m, l):
        return -0.5 * (l + LOG_2PI + (zz - m) ** 2 / jnp.exp(l))

    gs = [lnp(z, 0.0, 0.0) + LOG_W0,
          lnp(z, mu, lv) + LOG_W1,
          lnp(z, 0.0, LOGVAR_UNIFORM) + LOG_W2]
    return jax.scipy.special.logsumexp(jnp.stack(gs, -1), axis=-1)


if __name__ == "__main__":
    B, INPUT_DIM, HIDDEN_DIM, LATENT_DIM = 16, 256, 128, 64

    key = jax.random.PRNGKey(0)
    kx, kz, kp = jax.random.split(key, 3)

    # Bag-of-items style non-negative input (no zero-norm rows).
    x = jnp.abs(jax.random.normal(kx, (B, INPUT_DIM), jnp.float32)) + 0.1
    z = jax.random.normal(kz, (B, LATENT_DIM), jnp.float32)
    params = make_params(kp, INPUT_DIM, HIDDEN_DIM, LATENT_DIM)

    # One-time packing for the frozen prior (hoisted out of the hot path).
    packed = pack_params(params)

    # Feed x as bf16 (production: halves the dominant HBM stream).  block_k=128
    # forces 2 K-steps here so the streamed/accumulated w1 path is exercised;
    # B=16 with the default block_b=8 gives a 2-step parallel batch axis.
    x_bf16 = x.astype(jnp.bfloat16)
    out = jax.block_until_ready(composite_prior(x_bf16, z, packed, block_k=128))

    # Reference consumes the same bf16-rounded x values (apples-to-apples).
    ref = reference(x_bf16.astype(jnp.float32), z, params)
    np.testing.assert_allclose(np.asarray(out), np.asarray(ref),
                               rtol=2e-3, atol=2e-3)

    print("KERNEL_OK")
</pallas_src>

<mosaic_0001>
module attributes {stable_mosaic.version = 11 : i64} {
  func.func @composite_prior_kernel(%arg0: i32, %arg1: i32, %arg2: memref<8x128xbf16, #tpu.memory_space<vmem>>, %arg3: memref<8x128xf32, #tpu.memory_space<vmem>>, %arg4: memref<128x128xbf16, #tpu.memory_space<vmem>>, %arg5: memref<128x128xbf16, #tpu.memory_space<vmem>>, %arg6: memref<128x128xbf16, #tpu.memory_space<vmem>>, %arg7: memref<128x128xbf16, #tpu.memory_space<vmem>>, %arg8: memref<128x128xbf16, #tpu.memory_space<vmem>>, %arg9: memref<128x256xbf16, #tpu.memory_space<vmem>>, %arg10: memref<15x128xf32, #tpu.memory_space<vmem>>, %arg11: memref<1x256xf32, #tpu.memory_space<vmem>>, %arg12: memref<8x128xf32, #tpu.memory_space<vmem>>, %arg13: memref<8x128xf32, #tpu.memory_space<vmem>>, %arg14: memref<8x1xf32, #tpu.memory_space<vmem>>) attributes {dimension_semantics = [#tpu.dimension_semantics<parallel>, #tpu.dimension_semantics<arbitrary>], iteration_bounds = array<i64: 2, 2>, scalar_prefetch = 0 : i64, scratch_operands = 2 : i64, tpu.core_type = #tpu.core_type<tc>, window_params = [{transform_indices = @transform_0, window_bounds = array<i64: 8, 128>}, {transform_indices = @transform_1, window_bounds = array<i64: 8, 128>}, {transform_indices = @transform_2, window_bounds = array<i64: 128, 128>}, {pipeline_mode = #tpu.pipeline_mode<synchronous>, transform_indices = @transform_3, window_bounds = array<i64: 128, 128>}, {pipeline_mode = #tpu.pipeline_mode<synchronous>, transform_indices = @transform_4, window_bounds = array<i64: 128, 128>}, {pipeline_mode = #tpu.pipeline_mode<synchronous>, transform_indices = @transform_5, window_bounds = array<i64: 128, 128>}, {pipeline_mode = #tpu.pipeline_mode<synchronous>, transform_indices = @transform_6, window_bounds = array<i64: 128, 128>}, {pipeline_mode = #tpu.pipeline_mode<synchronous>, transform_indices = @transform_7, window_bounds = array<i64: 128, 256>}, {pipeline_mode = #tpu.pipeline_mode<synchronous>, transform_indices = @transform_8, window_bounds = array<i64: 15, 128>}, {pipeline_mode = #tpu.pipeline_mode<synchronous>, transform_indices = @transform_9, window_bounds = array<i64: 1, 256>}, {transform_indices = @transform_10, window_bounds = array<i64: 8, 128>}]} {
    %c0_i32 = arith.constant 0 : i32
    %0 = arith.cmpi eq, %arg1, %c0_i32 : i32
    %1 = arith.extui %0 : i1 to i32
    %c0_i32_0 = arith.constant 0 : i32
    %2 = arith.cmpi ne, %1, %c0_i32_0 : i32
    scf.if %2 {
      %cst_14 = arith.constant 0.000000e+00 : f32
      %19 = vector.broadcast %cst_14 : f32 to vector<8x128xf32>
      %c0_15 = arith.constant 0 : index
      %c0_16 = arith.constant 0 : index
      %20 = vector.load %arg13[%c0_15, %c0_16] : memref<8x128xf32, #tpu.memory_space<vmem>>, vector<8x128xf32>
      tpu.vector_store %arg13[%c0_15, %c0_16], %19 {strides = array<i32>} : memref<8x128xf32, #tpu.memory_space<vmem>>, vector<8x128xf32>,
      %cst_17 = arith.constant 0.000000e+00 : f32
      %21 = vector.broadcast %cst_17 : f32 to vector<8x1xf32>
      %c0_18 = arith.constant 0 : index
      %c0_19 = arith.constant 0 : index
      %22 = vector.load %arg14[%c0_18, %c0_19] : memref<8x1xf32, #tpu.memory_space<vmem>>, vector<8x1xf32>
      tpu.vector_store %arg14[%c0_18, %c0_19], %21 {strides = array<i32>} : memref<8x1xf32, #tpu.memory_space<vmem>>, vector<8x1xf32>,
    } else {
    }
    %c0 = arith.constant 0 : index
    %c0_1 = arith.constant 0 : index
    %3 = vector.load %arg2[%c0, %c0_1] : memref<8x128xbf16, #tpu.memory_space<vmem>>, vector<8x128xbf16>
    %4 = arith.extf %3 : vector<8x128xbf16> to vector<8x128xf32>
    %c0_2 = arith.constant 0 : index
    %c0_3 = arith.constant 0 : index
    %5 = vector.load %arg14[%c0_2, %c0_3] : memref<8x1xf32, #tpu.memory_space<vmem>>, vector<8x1xf32>
    %6 = arith.mulf %4, %4 : vector<8x128xf32>
    %cst = arith.constant dense<0.000000e+00> : vector<8xf32>
    %7 = vector.multi_reduction <add>, %6, %cst [1] : vector<8x128xf32> to vector<8xf32>
    %8 = vector.shape_cast %7 : vector<8xf32> to vector<8x1xf32>
    %9 = arith.addf %5, %8 : vector<8x1xf32>
    %c0_4 = arith.constant 0 : index
    %c0_5 = arith.constant 0 : index
    %10 = vector.load %arg14[%c0_4, %c0_5] : memref<8x1xf32, #tpu.memory_space<vmem>>, vector<8x1xf32>
    tpu.vector_store %arg14[%c0_4, %c0_5], %9 {strides = array<i32>} : memref<8x1xf32, #tpu.memory_space<vmem>>, vector<8x1xf32>,
    %c0_6 = arith.constant 0 : index
    %c0_7 = arith.constant 0 : index
    %11 = vector.load %arg13[%c0_6, %c0_7] : memref<8x128xf32, #tpu.memory_space<vmem>>, vector<8x128xf32>
    %c0_8 = arith.constant 0 : index
    %c0_9 = arith.constant 0 : index
    %12 = vector.load %arg4[%c0_8, %c0_9] : memref<128x128xbf16, #tpu.memory_space<vmem>>, vector<128x128xbf16>
    %cst_10 = arith.constant dense<0.000000e+00> : vector<8x128xf32>
    %13 = tpu.matmul %3, %12, %cst_10 {dimension_numbers = #tpu.dot_dimension_numbers<[1], [0], [0], [1], [0, 0, 1, 1], [], []>} : vector<8x128xbf16>, vector<128x128xbf16>, vector<8x128xf32> -> vector<8x128xf32>
    %14 = arith.addf %11, %13 : vector<8x128xf32>
    %c0_11 = arith.constant 0 : index
    %c0_12 = arith.constant 0 : index
    %15 = vector.load %arg13[%c0_11, %c0_12] : memref<8x128xf32, #tpu.memory_space<vmem>>, vector<8x128xf32>
    tpu.vector_store %arg13[%c0_11, %c0_12], %14 {strides = array<i32>} : memref<8x128xf32, #tpu.memory_space<vmem>>, vector<8x128xf32>,
    %c1_i32 = arith.constant 1 : i32
    %16 = arith.cmpi eq, %arg1, %c1_i32 : i32
    %17 = arith.extui %16 : i1 to i32
    %c0_i32_13 = arith.constant 0 : i32
    %18 = arith.cmpi ne, %17, %c0_i32_13 : i32
    scf.if %18 {
      %c0_14 = arith.constant 0 : index
      %c0_15 = arith.constant 0 : index
      %19 = vector.load %arg3[%c0_14, %c0_15] : memref<8x128xf32, #tpu.memory_space<vmem>>, vector<8x128xf32>
      %c0_16 = arith.constant 0 : index
      %c0_17 = arith.constant 0 : index
      %20 = vector.load %arg14[%c0_16, %c0_17] : memref<8x1xf32, #tpu.memory_space<vmem>>, vector<8x1xf32>
      %cst_18 = arith.constant 9.99999996E-13 : f32
      %21 = vector.broadcast %cst_18 : f32 to vector<8x1xf32>
      %22 = arith.addf %20, %21 : vector<8x1xf32>
      %23 = math.rsqrt %22 : vector<8x1xf32>
      %c0_19 = arith.constant 0 : index
      %c0_20 = arith.constant 0 : index
      %24 = vector.load %arg10[%c0_19, %c0_20] : memref<15x128xf32, #tpu.memory_space<vmem>>, vector<1x128xf32>
      %c1 = arith.constant 1 : index
      %c0_21 = arith.constant 0 : index
      %25 = vector.load %arg10[%c1, %c0_21] : memref<15x128xf32, #tpu.memory_space<vmem>>, vector<1x128xf32>
      %c2 = arith.constant 2 : index
      %c0_22 = arith.constant 0 : index
      %26 = vector.load %arg10[%c2, %c0_22] : memref<15x128xf32, #tpu.memory_space<vmem>>, vector<1x128xf32>
      %c0_23 = arith.constant 0 : index
      %c0_24 = arith.constant 0 : index
      %27 = vector.load %arg13[%c0_23, %c0_24] : memref<8x128xf32, #tpu.memory_space<vmem>>, vector<8x128xf32>
      %28 = vector.broadcast %23 : vector<8x1xf32> to vector<8x128xf32>
      %29 = arith.mulf %27, %28 : vector<8x128xf32>
      %30 = vector.broadcast %24 : vector<1x128xf32> to vector<8x128xf32>
      %31 = arith.addf %29, %30 : vector<8x128xf32>
      %32 = arith.negf %31 : vector<8x128xf32>
      %33 = math.exp %32 : vector<8x128xf32>
      %cst_25 = arith.constant 1.000000e+00 : f32
      %34 = vector.broadcast %cst_25 : f32 to vector<8x128xf32>
      %35 = arith.addf %34, %33 : vector<8x128xf32>
      %36 = arith.divf %34, %35 : vector<8x128xf32>
      %37 = arith.mulf %31, %36 : vector<8x128xf32>
      %cst_26 = arith.constant dense<0.000000e+00> : vector<8xf32>
      %38 = vector.multi_reduction <add>, %37, %cst_26 [1] : vector<8x128xf32> to vector<8xf32>
      %39 = vector.shape_cast %38 : vector<8xf32> to vector<8x1xf32>
      %cst_27 = arith.constant 1.280000e+02 : f32
      %40 = vector.broadcast %cst_27 : f32 to vector<8x1xf32>
      %41 = arith.divf %39, %40 : vector<8x1xf32>
      %42 = arith.mulf %37, %37 : vector<8x128xf32>
      %cst_28 = arith.constant dense<0.000000e+00> : vector<8xf32>
      %43 = vector.multi_reduction <add>, %42, %cst_28 [1] : vector<8x128xf32> to vector<8xf32>
      %44 = vector.shape_cast %43 : vector<8xf32> to vector<8x1xf32>
      %cst_29 = arith.constant 1.280000e+02 : f32
      %45 = vector.broadcast %cst_29 : f32 to vector<8x1xf32>
      %46 = arith.divf %44, %45 : vector<8x1xf32>
      %47 = arith.mulf %41, %41 : vector<8x1xf32>
      %48 = arith.subf %46, %47 : vector<8x1xf32>
      %49 = vector.broadcast %41 : vector<8x1xf32> to vector<8x128xf32>
      %50 = arith.subf %37, %49 : vector<8x128xf32>
      %cst_30 = arith.constant 1.000000e-01 : f32
      %51 = vector.broadcast %cst_30 : f32 to vector<8x1xf32>
      %52 = arith.addf %48, %51 : vector<8x1xf32>
      %53 = math.rsqrt %52 : vector<8x1xf32>
      %54 = vector.broadcast %53 : vector<8x1xf32> to vector<8x128xf32>
      %55 = arith.mulf %50, %54 : vector<8x128xf32>
      %56 = vector.broadcast %25 : vector<1x128xf32> to vector<8x128xf32>
      %57 = arith.mulf %55, %56 : vector<8x128xf32>
      %58 = vector.broadcast %26 : vector<1x128xf32> to vector<8x128xf32>
      %59 = arith.addf %57, %58 : vector<8x128xf32>
      %c3 = arith.constant 3 : index
      %c0_31 = arith.constant 0 : index
      %60 = vector.load %arg10[%c3, %c0_31] : memref<15x128xf32, #tpu.memory_space<vmem>>, vector<1x128xf32>
      %c4 = arith.constant 4 : index
      %c0_32 = arith.constant 0 : index
      %61 = vector.load %arg10[%c4, %c0_32] : memref<15x128xf32, #tpu.memory_space<vmem>>, vector<1x128xf32>
      %c5 = arith.constant 5 : index
      %c0_33 = arith.constant 0 : index
      %62 = vector.load %arg10[%c5, %c0_33] : memref<15x128xf32, #tpu.memory_space<vmem>>, vector<1x128xf32>
      %63 = arith.truncf %59 : vector<8x128xf32> to vector<8x128xbf16>
      %c0_34 = arith.constant 0 : index
      %c0_35 = arith.constant 0 : index
      %64 = vector.load %arg5[%c0_34, %c0_35] : memref<128x128xbf16, #tpu.memory_space<vmem>>, vector<128x128xbf16>
      %cst_36 = arith.constant dense<0.000000e+00> : vector<8x128xf32>
      %65 = tpu.matmul %63, %64, %cst_36 {dimension_numbers = #tpu.dot_dimension_numbers<[1], [0], [0], [1], [0, 0, 1, 1], [], []>} : vector<8x128xbf16>, vector<128x128xbf16>, vector<8x128xf32> -> vector<8x128xf32>
      %66 = vector.broadcast %60 : vector<1x128xf32> to vector<8x128xf32>
      %67 = arith.addf %65, %66 : vector<8x128xf32>
      %68 = arith.addf %67, %59 : vector<8x128xf32>
      %69 = arith.negf %68 : vector<8x128xf32>
      %70 = math.exp %69 : vector<8x128xf32>
      %cst_37 = arith.constant 1.000000e+00 : f32
      %71 = vector.broadcast %cst_37 : f32 to vector<8x128xf32>
      %72 = arith.addf %71, %70 : vector<8x128xf32>
      %73 = arith.divf %71, %72 : vector<8x128xf32>
      %74 = arith.mulf %68, %73 : vector<8x128xf32>
      %cst_38 = arith.constant dense<0.000000e+00> : vector<8xf32>
      %75 = vector.multi_reduction <add>, %74, %cst_38 [1] : vector<8x128xf32> to vector<8xf32>
      %76 = vector.shape_cast %75 : vector<8xf32> to vector<8x1xf32>
      %cst_39 = arith.constant 1.280000e+02 : f32
      %77 = vector.broadcast %cst_39 : f32 to vector<8x1xf32>
      %78 = arith.divf %76, %77 : vector<8x1xf32>
      %79 = arith.mulf %74, %74 : vector<8x128xf32>
      %cst_40 = arith.constant dense<0.000000e+00> : vector<8xf32>
      %80 = vector.multi_reduction <add>, %79, %cst_40 [1] : vector<8x128xf32> to vector<8xf32>
      %81 = vector.shape_cast %80 : vector<8xf32> to vector<8x1xf32>
      %cst_41 = arith.constant 1.280000e+02 : f32
      %82 = vector.broadcast %cst_41 : f32 to vector<8x1xf32>
      %83 = arith.divf %81, %82 : vector<8x1xf32>
      %84 = arith.mulf %78, %78 : vector<8x1xf32>
      %85 = arith.subf %83, %84 : vector<8x1xf32>
      %86 = vector.broadcast %78 : vector<8x1xf32> to vector<8x128xf32>
      %87 = arith.subf %74, %86 : vector<8x128xf32>
      %cst_42 = arith.constant 1.000000e-01 : f32
      %88 = vector.broadcast %cst_42 : f32 to vector<8x1xf32>
      %89 = arith.addf %85, %88 : vector<8x1xf32>
      %90 = math.rsqrt %89 : vector<8x1xf32>
      %91 = vector.broadcast %90 : vector<8x1xf32> to vector<8x128xf32>
      %92 = arith.mulf %87, %91 : vector<8x128xf32>
      %93 = vector.broadcast %61 : vector<1x128xf32> to vector<8x128xf32>
      %94 = arith.mulf %92, %93 : vector<8x128xf32>
      %95 = vector.broadcast %62 : vector<1x128xf32> to vector<8x128xf32>
      %96 = arith.addf %94, %95 : vector<8x128xf32>
      %97 = arith.addf %59, %96 : vector<8x128xf32>
      %c6 = arith.constant 6 : index
      %c0_43 = arith.constant 0 : index
      %98 = vector.load %arg10[%c6, %c0_43] : memref<15x128xf32, #tpu.memory_space<vmem>>, vector<1x128xf32>
      %c7 = arith.constant 7 : index
      %c0_44 = arith.constant 0 : index
      %99 = vector.load %arg10[%c7, %c0_44] : memref<15x128xf32, #tpu.memory_space<vmem>>, vector<1x128xf32>
      %c8 = arith.constant 8 : index
      %c0_45 = arith.constant 0 : index
      %100 = vector.load %arg10[%c8, %c0_45] : memref<15x128xf32, #tpu.memory_space<vmem>>, vector<1x128xf32>
      %101 = arith.truncf %96 : vector<8x128xf32> to vector<8x128xbf16>
      %c0_46 = arith.constant 0 : index
      %c0_47 = arith.constant 0 : index
      %102 = vector.load %arg6[%c0_46, %c0_47] : memref<128x128xbf16, #tpu.memory_space<vmem>>, vector<128x128xbf16>
      %cst_48 = arith.constant dense<0.000000e+00> : vector<8x128xf32>
      %103 = tpu.matmul %101, %102, %cst_48 {dimension_numbers = #tpu.dot_dimension_numbers<[1], [0], [0], [1], [0, 0, 1, 1], [], []>} : vector<8x128xbf16>, vector<128x128xbf16>, vector<8x128xf32> -> vector<8x128xf32>
      %104 = vector.broadcast %98 : vector<1x128xf32> to vector<8x128xf32>
      %105 = arith.addf %103, %104 : vector<8x128xf32>
      %106 = arith.addf %105, %97 : vector<8x128xf32>
      %107 = arith.negf %106 : vector<8x128xf32>
      %108 = math.exp %107 : vector<8x128xf32>
      %cst_49 = arith.constant 1.000000e+00 : f32
      %109 = vector.broadcast %cst_49 : f32 to vector<8x128xf32>
      %110 = arith.addf %109, %108 : vector<8x128xf32>
      %111 = arith.divf %109, %110 : vector<8x128xf32>
      %112 = arith.mulf %106, %111 : vector<8x128xf32>
      %cst_50 = arith.constant dense<0.000000e+00> : vector<8xf32>
      %113 = vector.multi_reduction <add>, %112, %cst_50 [1] : vector<8x128xf32> to vector<8xf32>
      %114 = vector.shape_cast %113 : vector<8xf32> to vector<8x1xf32>
      %cst_51 = arith.constant 1.280000e+02 : f32
      %115 = vector.broadcast %cst_51 : f32 to vector<8x1xf32>
      %116 = arith.divf %114, %115 : vector<8x1xf32>
      %117 = arith.mulf %112, %112 : vector<8x128xf32>
      %cst_52 = arith.constant dense<0.000000e+00> : vector<8xf32>
      %118 = vector.multi_reduction <add>, %117, %cst_52 [1] : vector<8x128xf32> to vector<8xf32>
      %119 = vector.shape_cast %118 : vector<8xf32> to vector<8x1xf32>
      %cst_53 = arith.constant 1.280000e+02 : f32
      %120 = vector.broadcast %cst_53 : f32 to vector<8x1xf32>
      %121 = arith.divf %119, %120 : vector<8x1xf32>
      %122 = arith.mulf %116, %116 : vector<8x1xf32>
      %123 = arith.subf %121, %122 : vector<8x1xf32>
      %124 = vector.broadcast %116 : vector<8x1xf32> to vector<8x128xf32>
      %125 = arith.subf %112, %124 : vector<8x128xf32>
      %cst_54 = arith.constant 1.000000e-01 : f32
      %126 = vector.broadcast %cst_54 : f32 to vector<8x1xf32>
      %127 = arith.addf %123, %126 : vector<8x1xf32>
      %128 = math.rsqrt %127 : vector<8x1xf32>
      %129 = vector.broadcast %128 : vector<8x1xf32> to vector<8x128xf32>
      %130 = arith.mulf %125, %129 : vector<8x128xf32>
      %131 = vector.broadcast %99 : vector<1x128xf32> to vector<8x128xf32>
      %132 = arith.mulf %130, %131 : vector<8x128xf32>
      %133 = vector.broadcast %100 : vector<1x128xf32> to vector<8x128xf32>
      %134 = arith.addf %132, %133 : vector<8x128xf32>
      %135 = arith.addf %97, %134 : vector<8x128xf32>
      %c9 = arith.constant 9 : index
      %c0_55 = arith.constant 0 : index
      %136 = vector.load %arg10[%c9, %c0_55] : memref<15x128xf32, #tpu.memory_space<vmem>>, vector<1x128xf32>
      %c10 = arith.constant 10 : index
      %c0_56 = arith.constant 0 : index
      %137 = vector.load %arg10[%c10, %c0_56] : memref<15x128xf32, #tpu.memory_space<vmem>>, vector<1x128xf32>
      %c11 = arith.constant 11 : index
      %c0_57 = arith.constant 0 : index
      %138 = vector.load %arg10[%c11, %c0_57] : memref<15x128xf32, #tpu.memory_space<vmem>>, vector<1x128xf32>
      %139 = arith.truncf %134 : vector<8x128xf32> to vector<8x128xbf16>
      %c0_58 = arith.constant 0 : index
      %c0_59 = arith.constant 0 : index
      %140 = vector.load %arg7[%c0_58, %c0_59] : memref<128x128xbf16, #tpu.memory_space<vmem>>, vector<128x128xbf16>
      %cst_60 = arith.constant dense<0.000000e+00> : vector<8x128xf32>
      %141 = tpu.matmul %139, %140, %cst_60 {dimension_numbers = #tpu.dot_dimension_numbers<[1], [0], [0], [1], [0, 0, 1, 1], [], []>} : vector<8x128xbf16>, vector<128x128xbf16>, vector<8x128xf32> -> vector<8x128xf32>
      %142 = vector.broadcast %136 : vector<1x128xf32> to vector<8x128xf32>
      %143 = arith.addf %141, %142 : vector<8x128xf32>
      %144 = arith.addf %143, %135 : vector<8x128xf32>
      %145 = arith.negf %144 : vector<8x128xf32>
      %146 = math.exp %145 : vector<8x128xf32>
      %cst_61 = arith.constant 1.000000e+00 : f32
      %147 = vector.broadcast %cst_61 : f32 to vector<8x128xf32>
      %148 = arith.addf %147, %146 : vector<8x128xf32>
      %149 = arith.divf %147, %148 : vector<8x128xf32>
      %150 = arith.mulf %144, %149 : vector<8x128xf32>
      %cst_62 = arith.constant dense<0.000000e+00> : vector<8xf32>
      %151 = vector.multi_reduction <add>, %150, %cst_62 [1] : vector<8x128xf32> to vector<8xf32>
      %152 = vector.shape_cast %151 : vector<8xf32> to vector<8x1xf32>
      %cst_63 = arith.constant 1.280000e+02 : f32
      %153 = vector.broadcast %cst_63 : f32 to vector<8x1xf32>
      %154 = arith.divf %152, %153 : vector<8x1xf32>
      %155 = arith.mulf %150, %150 : vector<8x128xf32>
      %cst_64 = arith.constant dense<0.000000e+00> : vector<8xf32>
      %156 = vector.multi_reduction <add>, %155, %cst_64 [1] : vector<8x128xf32> to vector<8xf32>
      %157 = vector.shape_cast %156 : vector<8xf32> to vector<8x1xf32>
      %cst_65 = arith.constant 1.280000e+02 : f32
      %158 = vector.broadcast %cst_65 : f32 to vector<8x1xf32>
      %159 = arith.divf %157, %158 : vector<8x1xf32>
      %160 = arith.mulf %154, %154 : vector<8x1xf32>
      %161 = arith.subf %159, %160 : vector<8x1xf32>
      %162 = vector.broadcast %154 : vector<8x1xf32> to vector<8x128xf32>
      %163 = arith.subf %150, %162 : vector<8x128xf32>
      %cst_66 = arith.constant 1.000000e-01 : f32
      %164 = vector.broadcast %cst_66 : f32 to vector<8x1xf32>
      %165 = arith.addf %161, %164 : vector<8x1xf32>
      %166 = math.rsqrt %165 : vector<8x1xf32>
      %167 = vector.broadcast %166 : vector<8x1xf32> to vector<8x128xf32>
      %168 = arith.mulf %163, %167 : vector<8x128xf32>
      %169 = vector.broadcast %137 : vector<1x128xf32> to vector<8x128xf32>
      %170 = arith.mulf %168, %169 : vector<8x128xf32>
      %171 = vector.broadcast %138 : vector<1x128xf32> to vector<8x128xf32>
      %172 = arith.addf %170, %171 : vector<8x128xf32>
      %173 = arith.addf %135, %172 : vector<8x128xf32>
      %c12 = arith.constant 12 : index
      %c0_67 = arith.constant 0 : index
      %174 = vector.load %arg10[%c12, %c0_67] : memref<15x128xf32, #tpu.memory_space<vmem>>, vector<1x128xf32>
      %c13 = arith.constant 13 : index
      %c0_68 = arith.constant 0 : index
      %175 = vector.load %arg10[%c13, %c0_68] : memref<15x128xf32, #tpu.memory_space<vmem>>, vector<1x128xf32>
      %c14 = arith.constant 14 : index
      %c0_69 = arith.constant 0 : index
      %176 = vector.load %arg10[%c14, %c0_69] : memref<15x128xf32, #tpu.memory_space<vmem>>, vector<1x128xf32>
      %177 = arith.truncf %172 : vector<8x128xf32> to vector<8x128xbf16>
      %c0_70 = arith.constant 0 : index
      %c0_71 = arith.constant 0 : index
      %178 = vector.load %arg8[%c0_70, %c0_71] : memref<128x128xbf16, #tpu.memory_space<vmem>>, vector<128x128xbf16>
      %cst_72 = arith.constant dense<0.000000e+00> : vector<8x128xf32>
      %179 = tpu.matmul %177, %178, %cst_72 {dimension_numbers = #tpu.dot_dimension_numbers<[1], [0], [0], [1], [0, 0, 1, 1], [], []>} : vector<8x128xbf16>, vector<128x128xbf16>, vector<8x128xf32> -> vector<8x128xf32>
      %180 = vector.broadcast %174 : vector<1x128xf32> to vector<8x128xf32>
      %181 = arith.addf %179, %180 : vector<8x128xf32>
      %182 = arith.addf %181, %173 : vector<8x128xf32>
      %183 = arith.negf %182 : vector<8x128xf32>
      %184 = math.exp %183 : vector<8x128xf32>
      %cst_73 = arith.constant 1.000000e+00 : f32
      %185 = vector.broadcast %cst_73 : f32 to vector<8x128xf32>
      %186 = arith.addf %185, %184 : vector<8x128xf32>
      %187 = arith.divf %185, %186 : vector<8x128xf32>
      %188 = arith.mulf %182, %187 : vector<8x128xf32>
      %cst_74 = arith.constant dense<0.000000e+00> : vector<8xf32>
      %189 = vector.multi_reduction <add>, %188, %cst_74 [1] : vector<8x128xf32> to vector<8xf32>
      %190 = vector.shape_cast %189 : vector<8xf32> to vector<8x1xf32>
      %cst_75 = arith.constant 1.280000e+02 : f32
      %191 = vector.broadcast %cst_75 : f32 to vector<8x1xf32>
      %192 = arith.divf %190, %191 : vector<8x1xf32>
      %193 = arith.mulf %188, %188 : vector<8x128xf32>
      %cst_76 = arith.constant dense<0.000000e+00> : vector<8xf32>
      %194 = vector.multi_reduction <add>, %193, %cst_76 [1] : vector<8x128xf32> to vector<8xf32>
      %195 = vector.shape_cast %194 : vector<8xf32> to vector<8x1xf32>
      %cst_77 = arith.constant 1.280000e+02 : f32
      %196 = vector.broadcast %cst_77 : f32 to vector<8x1xf32>
      %197 = arith.divf %195, %196 : vector<8x1xf32>
      %198 = arith.mulf %192, %192 : vector<8x1xf32>
      %199 = arith.subf %197, %198 : vector<8x1xf32>
      %200 = vector.broadcast %192 : vector<8x1xf32> to vector<8x128xf32>
      %201 = arith.subf %188, %200 : vector<8x128xf32>
      %cst_78 = arith.constant 1.000000e-01 : f32
      %202 = vector.broadcast %cst_78 : f32 to vector<8x1xf32>
      %203 = arith.addf %199, %202 : vector<8x1xf32>
      %204 = math.rsqrt %203 : vector<8x1xf32>
      %205 = vector.broadcast %204 : vector<8x1xf32> to vector<8x128xf32>
      %206 = arith.mulf %201, %205 : vector<8x128xf32>
      %207 = vector.broadcast %175 : vector<1x128xf32> to vector<8x128xf32>
      %208 = arith.mulf %206, %207 : vector<8x128xf32>
      %209 = vector.broadcast %176 : vector<1x128xf32> to vector<8x128xf32>
      %210 = arith.addf %208, %209 : vector<8x128xf32>
      %c0_79 = arith.constant 0 : index
      %c0_80 = arith.constant 0 : index
      %211 = vector.load %arg11[%c0_79, %c0_80] : memref<1x256xf32, #tpu.memory_space<vmem>>, vector<1x256xf32>
      %212 = arith.truncf %210 : vector<8x128xf32> to vector<8x128xbf16>
      %c0_81 = arith.constant 0 : index
      %c0_82 = arith.constant 0 : index
      %213 = vector.load %arg9[%c0_81, %c0_82] : memref<128x256xbf16, #tpu.memory_space<vmem>>, vector<128x256xbf16>
      %cst_83 = arith.constant dense<0.000000e+00> : vector<8x256xf32>
      %214 = tpu.matmul %212, %213, %cst_83 {dimension_numbers = #tpu.dot_dimension_numbers<[1], [0], [0], [1], [0, 0, 1, 1], [], []>} : vector<8x128xbf16>, vector<128x256xbf16>, vector<8x256xf32> -> vector<8x256xf32>
      %215 = vector.broadcast %211 : vector<1x256xf32> to vector<8x256xf32>
      %216 = arith.addf %214, %215 : vector<8x256xf32>
      %217 = vector.extract_strided_slice %216 {offsets = [0, 0], sizes = [8, 128], strides = [1, 1]} : vector<8x256xf32> to vector<8x128xf32>
      %218 = vector.extract_strided_slice %216 {offsets = [0, 128], sizes = [8, 128], strides = [1, 1]} : vector<8x256xf32> to vector<8x128xf32>
      %219 = arith.mulf %19, %19 : vector<8x128xf32>
      %cst_84 = arith.constant 1.83787704 : f32
      %220 = vector.broadcast %cst_84 : f32 to vector<8x128xf32>
      %221 = arith.addf %220, %219 : vector<8x128xf32>
      %cst_85 = arith.constant -5.000000e-01 : f32
      %222 = vector.broadcast %cst_85 : f32 to vector<8x128xf32>
      %223 = arith.mulf %222, %221 : vector<8x128xf32>
      %cst_86 = arith.constant -1.897120e+00 : f32
      %224 = vector.broadcast %cst_86 : f32 to vector<8x128xf32>
      %225 = arith.addf %223, %224 : vector<8x128xf32>
      %226 = arith.subf %19, %217 : vector<8x128xf32>
      %cst_87 = arith.constant 1.83787704 : f32
      %227 = vector.broadcast %cst_87 : f32 to vector<8x128xf32>
      %228 = arith.addf %218, %227 : vector<8x128xf32>
      %229 = arith.mulf %226, %226 : vector<8x128xf32>
      %cst_88 = arith.constant 0.000000e+00 : f32
      %230 = vector.broadcast %cst_88 : f32 to vector<8x128xf32>
      %231 = arith.subf %230, %218 : vector<8x128xf32>
      %232 = math.exp %231 : vector<8x128xf32>
      %233 = arith.mulf %229, %232 : vector<8x128xf32>
      %234 = arith.addf %228, %233 : vector<8x128xf32>
      %cst_89 = arith.constant -5.000000e-01 : f32
      %235 = vector.broadcast %cst_89 : f32 to vector<8x128xf32>
      %236 = arith.mulf %235, %234 : vector<8x128xf32>
      %cst_90 = arith.constant -0.287682086 : f32
      %237 = vector.broadcast %cst_90 : f32 to vector<8x128xf32>
      %238 = arith.addf %236, %237 : vector<8x128xf32>
      %cst_91 = arith.constant 4.5399931E-5 : f32
      %239 = vector.broadcast %cst_91 : f32 to vector<8x128xf32>
      %240 = arith.mulf %219, %239 : vector<8x128xf32>
      %cst_92 = arith.constant 11.8378773 : f32
      %241 = vector.broadcast %cst_92 : f32 to vector<8x128xf32>
      %242 = arith.addf %241, %240 : vector<8x128xf32>
      %cst_93 = arith.constant -5.000000e-01 : f32
      %243 = vector.broadcast %cst_93 : f32 to vector<8x128xf32>
      %244 = arith.mulf %243, %242 : vector<8x128xf32>
      %cst_94 = arith.constant -2.30258512 : f32
      %245 = vector.broadcast %cst_94 : f32 to vector<8x128xf32>
      %246 = arith.addf %244, %245 : vector<8x128xf32>
      %247 = arith.maximumf %225, %238 : vector<8x128xf32>
      %248 = arith.maximumf %247, %246 : vector<8x128xf32>
      %249 = arith.subf %225, %248 : vector<8x128xf32>
      %250 = math.exp %249 : vector<8x128xf32>
      %251 = arith.subf %238, %248 : vector<8x128xf32>
      %252 = math.exp %251 : vector<8x128xf32>
      %253 = arith.addf %250, %252 : vector<8x128xf32>
      %254 = arith.subf %246, %248 : vector<8x128xf32>
      %255 = math.exp %254 : vector<8x128xf32>
      %256 = arith.addf %253, %255 : vector<8x128xf32>
      %257 = math.log %256 : vector<8x128xf32>
      %258 = arith.addf %248, %257 : vector<8x128xf32>
      %c0_95 = arith.constant 0 : index
      %c0_96 = arith.constant 0 : index
      %259 = vector.load %arg12[%c0_95, %c0_96] : memref<8x128xf32, #tpu.memory_space<vmem>>, vector<8x128xf32>
      tpu.vector_store %arg12[%c0_95, %c0_96], %258 {strides = array<i32>} : memref<8x128xf32, #tpu.memory_space<vmem>>, vector<8x128xf32>,
    } else {
    }
    return
  }
  func.func @transform_0(%arg0: i32, %arg1: i32) -> (i32, i32) {
    %c0_i32 = arith.constant 0 : i32
    return %arg0, %arg1 : i32, i32
  }
  func.func @transform_1(%arg0: i32, %arg1: i32) -> (i32, i32) {
    %c0_i32 = arith.constant 0 : i32
    %c0_i32_0 = arith.constant 0 : i32
    return %arg0, %c0_i32 : i32, i32
  }
  func.func @transform_2(%arg0: i32, %arg1: i32) -> (i32, i32) {
    %c0_i32 = arith.constant 0 : i32
    %c0_i32_0 = arith.constant 0 : i32
    return %arg1, %c0_i32 : i32, i32
  }
  func.func @transform_3(%arg0: i32, %arg1: i32) -> (i32, i32) {
    %c0_i32 = arith.constant 0 : i32
    %c0_i32_0 = arith.constant 0 : i32
    %c0_i32_1 = arith.constant 0 : i32
    return %c0_i32, %c0_i32_0 : i32, i32
  }
  func.func @transform_4(%arg0: i32, %arg1: i32) -> (i32, i32) {
    %c0_i32 = arith.constant 0 : i32
    %c0_i32_0 = arith.constant 0 : i32
    %c0_i32_1 = arith.constant 0 : i32
    return %c0_i32, %c0_i32_0 : i32, i32
  }
  func.func @transform_5(%arg0: i32, %arg1: i32) -> (i32, i32) {
    %c0_i32 = arith.constant 0 : i32
    %c0_i32_0 = arith.constant 0 : i32
    %c0_i32_1 = arith.constant 0 : i32
    return %c0_i32, %c0_i32_0 : i32, i32
  }
  func.func @transform_6(%arg0: i32, %arg1: i32) -> (i32, i32) {
    %c0_i32 = arith.constant 0 : i32
    %c0_i32_0 = arith.constant 0 : i32
    %c0_i32_1 = arith.constant 0 : i32
    return %c0_i32, %c0_i32_0 : i32, i32
  }
  func.func @transform_7(%arg0: i32, %arg1: i32) -> (i32, i32) {
    %c0_i32 = arith.constant 0 : i32
    %c0_i32_0 = arith.constant 0 : i32
    %c0_i32_1 = arith.constant 0 : i32
    return %c0_i32, %c0_i32_0 : i32, i32
  }
  func.func @transform_8(%arg0: i32, %arg1: i32) -> (i32, i32) {
    %c0_i32 = arith.constant 0 : i32
    %c0_i32_0 = arith.constant 0 : i32
    %c0_i32_1 = arith.constant 0 : i32
    return %c0_i32, %c0_i32_0 : i32, i32
  }
  func.func @transform_9(%arg0: i32, %arg1: i32) -> (i32, i32) {
    %c0_i32 = arith.constant 0 : i32
    %c0_i32_0 = arith.constant 0 : i32
    %c0_i32_1 = arith.constant 0 : i32
    return %c0_i32, %c0_i32_0 : i32, i32
  }
  func.func @transform_10(%arg0: i32, %arg1: i32) -> (i32, i32) {
    %c0_i32 = arith.constant 0 : i32
    %c0_i32_0 = arith.constant 0 : i32
    return %arg0, %c0_i32 : i32, i32
  }
}

</mosaic_0001>

<llo_original>
// kernel: tpu_custom_call.1
$region0: #{tpu_custom_call.1}
  #allocation0 [shape = 'u32[]', space=smem, size = 0x4, offset = 0x4, fixed_abs, tag = 'smem constant byte address 0x4 - core index']
  #allocation1 [shape = 'u32[144,128]{1,0:T(1,128)}', space=vmem, size = 0x12000, scoped, tag = 'internal scratch']
  #allocation2 [shape = 'f32[8,128]{1,0:T(8,128)}', space=vmem, size = 0x1000, scoped, tag = 'scratch operand']
  #allocation3 [shape = 'f32[8,1]{1,0:T(8,128)}', space=vmem, size = 0x1000, scoped, tag = 'scratch operand']
  %s0 = inlined_call_operand.hbm [shape: bf16[16,256], index: 0, kind: input, shape index: {}]
  %s1 = inlined_call_operand.hbm [shape: f32[16,128], index: 1, kind: input, shape index: {}]
  %s2 = inlined_call_operand.hbm [shape: bf16[256,128], index: 2, kind: input, shape index: {}]
  %s3 = inlined_call_operand.hbm [shape: bf16[128,128], index: 3, kind: input, shape index: {}]
  %s4 = inlined_call_operand.hbm [shape: bf16[128,128], index: 4, kind: input, shape index: {}]
  %s5 = inlined_call_operand.hbm [shape: bf16[128,128], index: 5, kind: input, shape index: {}]
  %s6 = inlined_call_operand.hbm [shape: bf16[128,128], index: 6, kind: input, shape index: {}]
  %s7 = inlined_call_operand.hbm [shape: bf16[128,256], index: 7, kind: input, shape index: {}]
  %s8 = inlined_call_operand.hbm [shape: f32[15,128], index: 8, kind: input, shape index: {}]
  %s9 = inlined_call_operand.vmem [shape: f32[1,256], index: 9, kind: input, shape index: {}]
  %s10 = inlined_call_operand.hbm [shape: f32[16,128], index: 10, kind: output, shape index: {}]
  %s11 = sld [smem:[#allocation0]]
  $region117: #{tpu_custom_call.1} parent=0
    _
  %s13 = ssub.s32 1, %s11
  %s14 = scalar_select 0, %s13, %s11
  $region1: #{tpu_custom_call.1} parent=0
    #allocation4 [shape = 'u8[4096]{0}', space=vmem, size = 0x1000, scoped, tag = 'input window, operand 0']
    #allocation5 [shape = 's32[2]{0}', space=sflag, size = 0x8, scoped, tag = 'scoped memory for tpu_custom_call.1']
    #allocation6 [shape = 's32[2]{0}', space=sflag, size = 0x8, scoped, tag = 'scoped memory for tpu_custom_call.1']
    #allocation7 [shape = 'u8[8192]{0}', space=vmem, size = 0x2000, scoped, tag = 'input window, operand 1']
    #allocation8 [shape = 's32[2]{0}', space=sflag, size = 0x8, scoped, tag = 'scoped memory for tpu_custom_call.1']
    #allocation9 [shape = 'u8[65536]{0}', space=vmem, size = 0x10000, scoped, tag = 'input window, operand 2']
    #allocation10 [shape = 'u8[32768]{0}', space=vmem, size = 0x8000, scoped, tag = 'input window, operand 3, single buffered']
    #allocation11 [shape = 's32[1]{0}', space=sflag, size = 0x4, scoped, tag = 'scoped memory for tpu_custom_call.1']
    #allocation12 [shape = 'u8[32768]{0}', space=vmem, size = 0x8000, scoped, tag = 'input window, operand 4, single buffered']
    #allocation13 [shape = 'u8[32768]{0}', space=vmem, size = 0x8000, scoped, tag = 'input window, operand 5, single buffered']
    #allocation14 [shape = 's32[1]{0}', space=sflag, size = 0x4, scoped, tag = 'scoped memory for tpu_custom_call.1']
    #allocation15 [shape = 'u8[32768]{0}', space=vmem, size = 0x8000, scoped, tag = 'input window, operand 6, single buffered']
    #allocation16 [shape = 'u8[65536]{0}', space=vmem, size = 0x10000, scoped, tag = 'input window, operand 7, single buffered']
    #allocation17 [shape = 's32[1]{0}', space=sflag, size = 0x4, scoped, tag = 'scoped memory for tpu_custom_call.1']
    #allocation18 [shape = 'u8[8192]{0}', space=vmem, size = 0x2000, scoped, tag = 'input window, operand 8, single buffered']
    #allocation19 [shape = 'u8[8192]{0}', space=vmem, size = 0x2000, scoped, tag = 'output window, operand 0']
    %15 = vsyncpa [#allocation5], 0
    %s16 = scalar_lea.sflag [#allocation5], 1
    %17 = vsyncpa %s16, 0
    %18 = vsyncpa [#allocation8], 0
    %s19 = scalar_lea.sflag [#allocation8], 1
    %20 = vsyncpa %s19, 0
    %21 = vsyncpa [#allocation11], 0
    %22 = vsyncpa [#allocation14], 0
    %23 = vsyncpa [#allocation17], 0
    %24 = vsyncpa [#allocation6], 0
    %s25 = scalar_lea.sflag [#allocation6], 1
    %26 = vsyncpa %s25, 0
    loop: start=0, step=1, limit=6
    $region2: #{tpu_custom_call.1} parent=1 // loop_pre_header
      _
    $region3: #{tpu_custom_call.1} parent=1 // loop_header
      %s28 = sphi 0, %s32
      %p29 = scmp.ge.s32.totalorder %s28, 6
      %s35 = sphi 0, %s47
      %s36 = sphi 0, %s43
      %s37 = sphi 0, %s35
      %s38 = sphi 0, %s36
      %s39 = sphi 0, %s37
      %s40 = sphi 0, %s38
      %s52 = sphi 0, %s54
      %s55 = sphi 0, %s52
      %s56 = sphi 0, %s55
      %s72 = sphi 0, %s56
      %s78 = sphi 0, %s80
      %s81 = sphi 0, %s78
      %s82 = sphi 0, %s81
      %s98 = sphi 0, %s82
      %s104 = sphi 0, %s106
      %s107 = sphi 0, %s104
      %s108 = sphi 0, %s107
      %s124 = sphi 0, %s108
      %s128 = sphi 0, %s128
      %s130 = sphi 0, %s128
      %s131 = sphi 0, %s130
      %s145 = sphi 0, %s131
      %s149 = sphi 0, %s149
      %s151 = sphi 0, %s149
      %s152 = sphi 0, %s151
      %s166 = sphi 0, %s152
      %s170 = sphi 0, %s170
      %s172 = sphi 0, %s170
      %s173 = sphi 0, %s172
      %s187 = sphi 0, %s173
      %s191 = sphi 0, %s191
      %s193 = sphi 0, %s191
      %s194 = sphi 0, %s193
      %s208 = sphi 0, %s194
      %s212 = sphi 0, %s212
      %s214 = sphi 0, %s212
      %s215 = sphi 0, %s214
      %s229 = sphi 0, %s215
      %s233 = sphi 0, %s233
      %s235 = sphi 0, %s233
      %s236 = sphi 0, %s235
      %s250 = sphi 0, %s236
      %s254 = sphi 0, %s254
      %s256 = sphi 0, %s254
      %s257 = sphi 0, %s256
      %s271 = sphi 0, %s257
      %s277 = sphi 0, %s279
      %s280 = sphi 0, %s277
      %s281 = sphi 0, %s280
      %s297 = sphi 0, %s281
    $region4: #{tpu_custom_call.1} parent=1 // loop_header_branch
      %31 = sbr.rel (%p29) target = $region8
    $region5: #{tpu_custom_call.1} parent=1 // loop_body
      %s33 = ssub.s32 %s28, 1
      %s34 = ssub.s32 %s28, 2
      %s41 = sadd.s32 1, %s36
      %p42 = scmp.ge.s32.totalorder %s41, 2
      %s43 = scalar_select %p42, 0, %s41
      %s44 = sadd.s32 1, %s35
      %s45 = scalar_select %p42, %s44, %s35
      %p46 = scmp.ge.s32.totalorder %s45, 2
      %s47 = scalar_select %p46, 0, %s45
      %s48 = ssub.s32 %s35, %s47
      %s49 = ssub.s32 %s36, %s43
      %s50 = sor.u32 %s48, %s49
      %p51 = scmp.eq.s32.totalorder %s50, 0
      %s53 = sadd.s32 %s52, 1
      %s54 = scalar_select %p51, %s52, %s53
      %p57 = pneg %p51
      %p58 = scmp.eq.s32.totalorder %s28, 3
      %p59 = por %p57, %p58
      %p60 = scmp.ne.s32.totalorder %s52, %s55
      %p61 = scmp.eq.s32.totalorder %s28, 0
      %p62 = por %p60, %p61
      %p63 = scmp.ne.s32.totalorder %s52, %s55
      %p64 = scmp.eq.s32.totalorder %s33, 3
      %p65 = por %p63, %p64
      %p66 = scmp.ne.s32.totalorder %s55, %s56
      %p67 = scmp.eq.s32.totalorder %s33, 0
      %p68 = por %p66, %p67
      %p69 = scmp.ne.s32.totalorder %s55, %s56
      %p70 = scmp.eq.s32.totalorder %s34, 3
      %p71 = por %p69, %p70
      %p73 = scmp.ne.s32.totalorder %s56, %s72
      %p74 = scmp.eq.s32.totalorder %s34, 0
      %p75 = por %p73, %p74
      %s76 = ssub.s32 %s35, %s47
      %p77 = scmp.eq.s32.totalorder %s76, 0
      %s79 = sadd.s32 %s78, 1
      %s80 = scalar_select %p77, %s78, %s79
      %p83 = pneg %p77
      %p84 = scmp.eq.s32.totalorder %s28, 3
      %p85 = por %p83, %p84
      %p86 = scmp.ne.s32.totalorder %s78, %s81
      %p87 = scmp.eq.s32.totalorder %s28, 0
      %p88 = por %p86, %p87
      %p89 = scmp.ne.s32.totalorder %s78, %s81
      %p90 = scmp.eq.s32.totalorder %s33, 3
      %p91 = por %p89, %p90
      %p92 = scmp.ne.s32.totalorder %s81, %s82
      %p93 = scmp.eq.s32.totalorder %s33, 0
      %p94 = por %p92, %p93
      %p95 = scmp.ne.s32.totalorder %s81, %s82
      %p96 = scmp.eq.s32.totalorder %s34, 3
      %p97 = por %p95, %p96
      %p99 = scmp.ne.s32.totalorder %s82, %s98
      %p100 = scmp.eq.s32.totalorder %s34, 0
      %p101 = por %p99, %p100
      %s102 = ssub.s32 %s36, %s43
      %p103 = scmp.eq.s32.totalorder %s102, 0
      %s105 = sadd.s32 %s104, 1
      %s106 = scalar_select %p103, %s104, %s105
      %p109 = pneg %p103
      %p110 = scmp.eq.s32.totalorder %s28, 3
      %p111 = por %p109, %p110
      %p112 = scmp.ne.s32.totalorder %s104, %s107
      %p113 = scmp.eq.s32.totalorder %s28, 0
      %p114 = por %p112, %p113
      %p115 = scmp.ne.s32.totalorder %s104, %s107
      %p116 = scmp.eq.s32.totalorder %s33, 3
      %p117 = por %p115, %p116
      %p118 = scmp.ne.s32.totalorder %s107, %s108
      %p119 = scmp.eq.s32.totalorder %s33, 0
      %p120 = por %p118, %p119
      %p121 = scmp.ne.s32.totalorder %s107, %s108
      %p122 = scmp.eq.s32.totalorder %s34, 3
      %p123 = por %p121, %p122
      %p125 = scmp.ne.s32.totalorder %s108, %s124
      %p126 = scmp.eq.s32.totalorder %s34, 0
      %p127 = por %p125, %p126
      %s129 = sadd.s32 %s128, 1
      %p132 = scmp.eq.s32.totalorder %s28, 3
      %p133 = scmp.ne.s32.totalorder %s128, %s130
      %p134 = scmp.eq.s32.totalorder %s28, 0
      %p135 = por %p133, %p134
      %p136 = scmp.ne.s32.totalorder %s128, %s130
      %p137 = scmp.eq.s32.totalorder %s33, 3
      %p138 = por %p136, %p137
      %p139 = scmp.ne.s32.totalorder %s130, %s131
      %p140 = scmp.eq.s32.totalorder %s33, 0
      %p141 = por %p139, %p140
      %p142 = scmp.ne.s32.totalorder %s130, %s131
      %p143 = scmp.eq.s32.totalorder %s34, 3
      %p144 = por %p142, %p143
      %p146 = scmp.ne.s32.totalorder %s131, %s145
      %p147 = scmp.eq.s32.totalorder %s34, 0
      %p148 = por %p146, %p147
      %s150 = sadd.s32 %s149, 1
      %p153 = scmp.eq.s32.totalorder %s28, 3
      %p154 = scmp.ne.s32.totalorder %s149, %s151
      %p155 = scmp.eq.s32.totalorder %s28, 0
      %p156 = por %p154, %p155
      %p157 = scmp.ne.s32.totalorder %s149, %s151
      %p158 = scmp.eq.s32.totalorder %s33, 3
      %p159 = por %p157, %p158
      %p160 = scmp.ne.s32.totalorder %s151, %s152
      %p161 = scmp.eq.s32.totalorder %s33, 0
      %p162 = por %p160, %p161
      %p163 = scmp.ne.s32.totalorder %s151, %s152
      %p164 = scmp.eq.s32.totalorder %s34, 3
      %p165 = por %p163, %p164
      %p167 = scmp.ne.s32.totalorder %s152, %s166
      %p168 = scmp.eq.s32.totalorder %s34, 0
      %p169 = por %p167, %p168
      %s171 = sadd.s32 %s170, 1
      %p174 = scmp.eq.s32.totalorder %s28, 3
      %p175 = scmp.ne.s32.totalorder %s170, %s172
      %p176 = scmp.eq.s32.totalorder %s28, 0
      %p177 = por %p175, %p176
      %p178 = scmp.ne.s32.totalorder %s170, %s172
      %p179 = scmp.eq.s32.totalorder %s33, 3
      %p180 = por %p178, %p179
      %p181 = scmp.ne.s32.totalorder %s172, %s173
      %p182 = scmp.eq.s32.totalorder %s33, 0
      %p183 = por %p181, %p182
      %p184 = scmp.ne.s32.totalorder %s172, %s173
      %p185 = scmp.eq.s32.totalorder %s34, 3
      %p186 = por %p184, %p185
      %p188 = scmp.ne.s32.totalorder %s173, %s187
      %p189 = scmp.eq.s32.totalorder %s34, 0
      %p190 = por %p188, %p189
      %s192 = sadd.s32 %s191, 1
      %p195 = scmp.eq.s32.totalorder %s28, 3
      %p196 = scmp.ne.s32.totalorder %s191, %s193
      %p197 = scmp.eq.s32.totalorder %s28, 0
      %p198 = por %p196, %p197
      %p199 = scmp.ne.s32.totalorder %s191, %s193
      %p200 = scmp.eq.s32.totalorder %s33, 3
      %p201 = por %p199, %p200
      %p202 = scmp.ne.s32.totalorder %s193, %s194
      %p203 = scmp.eq.s32.totalorder %s33, 0
      %p204 = por %p202, %p203
      %p205 = scmp.ne.s32.totalorder %s193, %s194
      %p206 = scmp.eq.s32.totalorder %s34, 3
      %p207 = por %p205, %p206
      %p209 = scmp.ne.s32.totalorder %s194, %s208
      %p210 = scmp.eq.s32.totalorder %s34, 0
      %p211 = por %p209, %p210
      %s213 = sadd.s32 %s212, 1
      %p216 = scmp.eq.s32.totalorder %s28, 3
      %p217 = scmp.ne.s32.totalorder %s212, %s214
      %p218 = scmp.eq.s32.totalorder %s28, 0
      %p219 = por %p217, %p218
      %p220 = scmp.ne.s32.totalorder %s212, %s214
      %p221 = scmp.eq.s32.totalorder %s33, 3
      %p222 = por %p220, %p221
      %p223 = scmp.ne.s32.totalorder %s214, %s215
      %p224 = scmp.eq.s32.totalorder %s33, 0
      %p225 = por %p223, %p224
      %p226 = scmp.ne.s32.totalorder %s214, %s215
      %p227 = scmp.eq.s32.totalorder %s34, 3
      %p228 = por %p226, %p227
      %p230 = scmp.ne.s32.totalorder %s215, %s229
      %p231 = scmp.eq.s32.totalorder %s34, 0
      %p232 = por %p230, %p231
      %s234 = sadd.s32 %s233, 1
      %p237 = scmp.eq.s32.totalorder %s28, 3
      %p238 = scmp.ne.s32.totalorder %s233, %s235
      %p239 = scmp.eq.s32.totalorder %s28, 0
      %p240 = por %p238, %p239
      %p241 = scmp.ne.s32.totalorder %s233, %s235
      %p242 = scmp.eq.s32.totalorder %s33, 3
      %p243 = por %p241, %p242
      %p244 = scmp.ne.s32.totalorder %s235, %s236
      %p245 = scmp.eq.s32.totalorder %s33, 0
      %p246 = por %p244, %p245
      %p247 = scmp.ne.s32.totalorder %s235, %s236
      %p248 = scmp.eq.s32.totalorder %s34, 3
      %p249 = por %p247, %p248
      %p251 = scmp.ne.s32.totalorder %s236, %s250
      %p252 = scmp.eq.s32.totalorder %s34, 0
      %p253 = por %p251, %p252
      %s255 = sadd.s32 %s254, 1
      %p258 = scmp.eq.s32.totalorder %s28, 3
      %p259 = scmp.ne.s32.totalorder %s254, %s256
      %p260 = scmp.eq.s32.totalorder %s28, 0
      %p261 = por %p259, %p260
      %p262 = scmp.ne.s32.totalorder %s254, %s256
      %p263 = scmp.eq.s32.totalorder %s33, 3
      %p264 = por %p262, %p263
      %p265 = scmp.ne.s32.totalorder %s256, %s257
      %p266 = scmp.eq.s32.totalorder %s33, 0
      %p267 = por %p265, %p266
      %p268 = scmp.ne.s32.totalorder %s256, %s257
      %p269 = scmp.eq.s32.totalorder %s34, 3
      %p270 = por %p268, %p269
      %p272 = scmp.ne.s32.totalorder %s257, %s271
      %p273 = scmp.eq.s32.totalorder %s34, 0
      %p274 = por %p272, %p273
      %s275 = ssub.s32 %s35, %s47
      %p276 = scmp.eq.s32.totalorder %s275, 0
      %s278 = sadd.s32 %s277, 1
      %s279 = scalar_select %p276, %s277, %s278
      %p282 = pneg %p276
      %p283 = scmp.eq.s32.totalorder %s28, 3
      %p284 = por %p282, %p283
      %p285 = scmp.ne.s32.totalorder %s277, %s280
      %p286 = scmp.eq.s32.totalorder %s28, 0
      %p287 = por %p285, %p286
      %p288 = scmp.ne.s32.totalorder %s277, %s280
      %p289 = scmp.eq.s32.totalorder %s33, 3
      %p290 = por %p288, %p289
      %p291 = scmp.ne.s32.totalorder %s280, %s281
      %p292 = scmp.eq.s32.totalorder %s33, 0
      %p293 = por %p291, %p292
      %p294 = scmp.ne.s32.totalorder %s280, %s281
      %p295 = scmp.eq.s32.totalorder %s34, 3
      %p296 = por %p294, %p295
      %p298 = scmp.ne.s32.totalorder %s281, %s297
      %p299 = scmp.eq.s32.totalorder %s34, 0
      %p300 = por %p298, %p299
      %p301 = scmp.le.s32.totalorder 1, %s28
      %p302 = scmp.lt.s32.totalorder %s28, 5
      %p303 = pnand %p301, %p302
      %p304 = pneg %p303
      // Predicated region
      $region9: #{tpu_custom_call.1} parent=5 // pred_check
        _
      $region10: #{tpu_custom_call.1} parent=5 // pred_check_branch
        %306 = sbr.rel (%p303) target = $region12
      $region11: #{tpu_custom_call.1} parent=5 // pred_region
        %s307 = ssub.s32 %s28, 1
        // Predicated region
        $region13: #{tpu_custom_call.1} parent=11 // pred_check
          %p308 = pneg %p141
        $region14: #{tpu_custom_call.1} parent=11 // pred_check_branch
          %310 = sbr.rel (%p308) target = $region16
        $region15: #{tpu_custom_call.1} parent=11 // pred_region
          %s312 = ssub.s32 1024, 1024
          %313 = vsyncadd [#allocation11], %s312
          %s314 = sshll.u32 [#allocation10], 4
          %s315 = int_to_ptr.vmem [resolvable:$true] %s314
          %320 = dma.hbm_to_vmem [thread:$0]  %s3, 1024, %s315, [#allocation11], 64, 64, 4
        $region16: #{tpu_custom_call.1} parent=11 // pred_fallthru
          _
        // Predicated region
        $region17: #{tpu_custom_call.1} parent=11 // pred_check
          %p321 = pneg %p162
        $region18: #{tpu_custom_call.1} parent=11 // pred_check_branch
          %323 = sbr.rel (%p321) target = $region20
        $region19: #{tpu_custom_call.1} parent=11 // pred_region
          %s325 = ssub.s32 1024, 1024
          %326 = vsyncadd [#allocation11], %s325
          %s327 = sshll.u32 [#allocation12], 4
          %s328 = int_to_ptr.vmem [resolvable:$true] %s327
          %333 = dma.hbm_to_vmem [thread:$0]  %s4, 1024, %s328, [#allocation11], 64, 64, 4
        $region20: #{tpu_custom_call.1} parent=11 // pred_fallthru
          _
        // Predicated region
        $region21: #{tpu_custom_call.1} parent=11 // pred_check
          %p334 = pneg %p183
        $region22: #{tpu_custom_call.1} parent=11 // pred_check_branch
          %336 = sbr.rel (%p334) target = $region24
        $region23: #{tpu_custom_call.1} parent=11 // pred_region
          %s338 = ssub.s32 1024, 1024
          %339 = vsyncadd [#allocation14], %s338
          %s340 = sshll.u32 [#allocation13], 4
          %s341 = int_to_ptr.vmem [resolvable:$true] %s340
          %346 = dma.hbm_to_vmem [thread:$0]  %s5, 1024, %s341, [#allocation14], 64, 64, 4
        $region24: #{tpu_custom_call.1} parent=11 // pred_fallthru
          _
        // Predicated region
        $region25: #{tpu_custom_call.1} parent=11 // pred_check
          %p347 = pneg %p204
        $region26: #{tpu_custom_call.1} parent=11 // pred_check_branch
          %349 = sbr.rel (%p347) target = $region28
        $region27: #{tpu_custom_call.1} parent=11 // pred_region
          %s351 = ssub.s32 1024, 1024
          %352 = vsyncadd [#allocation14], %s351
          %s353 = sshll.u32 [#allocation15], 4
          %s354 = int_to_ptr.vmem [resolvable:$true] %s353
          %359 = dma.hbm_to_vmem [thread:$0]  %s6, 1024, %s354, [#allocation14], 64, 64, 4
        $region28: #{tpu_custom_call.1} parent=11 // pred_fallthru
          _
        // Predicated region
        $region29: #{tpu_custom_call.1} parent=11 // pred_check
          %p360 = pneg %p225
        $region30: #{tpu_custom_call.1} parent=11 // pred_check_branch
          %362 = sbr.rel (%p360) target = $region32
        $region31: #{tpu_custom_call.1} parent=11 // pred_region
          %s364 = ssub.s32 2048, 2048
          %365 = vsyncadd [#allocation17], %s364
          %s366 = sshll.u32 [#allocation16], 4
          %s367 = int_to_ptr.vmem [resolvable:$true] %s366
          %372 = dma.hbm_to_vmem [thread:$0]  %s7, 2048, %s367, [#allocation17], 128, 128, 8
        $region32: #{tpu_custom_call.1} parent=11 // pred_fallthru
          _
        // Predicated region
        $region33: #{tpu_custom_call.1} parent=11 // pred_check
          %p373 = pneg %p246
        $region34: #{tpu_custom_call.1} parent=11 // pred_check_branch
          %375 = sbr.rel (%p373) target = $region36
        $region35: #{tpu_custom_call.1} parent=11 // pred_region
          %s377 = ssub.s32 256, 256
          %378 = vsyncadd [#allocation17], %s377
          %s379 = sshll.u32 [#allocation18], 4
          %s380 = int_to_ptr.vmem [resolvable:$true] %s379
          %385 = dma.hbm_to_vmem [thread:$0]  %s8, 256, %s380, [#allocation17], 128, 128, 8
        $region36: #{tpu_custom_call.1} parent=11 // pred_fallthru
          _
        // Predicated region
        $region37: #{tpu_custom_call.1} parent=11 // pred_check
          %p386 = pneg %p267
        $region38: #{tpu_custom_call.1} parent=11 // pred_check_branch
          %388 = sbr.rel (%p386) target = $region40
        $region39: #{tpu_custom_call.1} parent=11 // pred_region
          _
        $region40: #{tpu_custom_call.1} parent=11 // pred_fallthru
          _
      $region12: #{tpu_custom_call.1} parent=5 // pred_fallthru
        _
      %p389 = scmp.lt.s32.totalorder %s28, 4
      // Predicated region
      $region41: #{tpu_custom_call.1} parent=5 // pred_check
        %p390 = pneg %p389
      $region42: #{tpu_custom_call.1} parent=5 // pred_check_branch
        %392 = sbr.rel (%p390) target = $region44
      $region43: #{tpu_custom_call.1} parent=5 // pred_region
        // Predicated region
        $region45: #{tpu_custom_call.1} parent=43 // pred_check
          %p393 = pneg %p62
        $region46: #{tpu_custom_call.1} parent=43 // pred_check_branch
          %395 = sbr.rel (%p393) target = $region48
        $region47: #{tpu_custom_call.1} parent=43 // pred_region
          %s396 = sand.u32 %s52, 1
          %s397 = scalar_lea.sflag [#allocation5], %s396
          %s398 = sand.u32 %s52, 1
          %s399 = smul.addr %s398, 4
          %s400 = scalar_lea.vmem [#allocation4], %s399
          %s402 = ssub.s32 64, 64
          %403 = vsyncadd %s397, %s402
          %s404 = smul.addr %s35, 2
          %s405 = sadd.s32 %s36, %s404
          %s406 = smul.addr %s405, 64
          %s407 = scalar_lea.hbm %s0, %s406
          %s409 = sshll.u32 %s400, 4
          %s410 = int_to_ptr.vmem [resolvable:$true] %s409
          %412 = dma.hbm_to_vmem [thread:$0]  %s407, 64, %s410, %s397
        $region48: #{tpu_custom_call.1} parent=43 // pred_fallthru
          _
        // Predicated region
        $region49: #{tpu_custom_call.1} parent=43 // pred_check
          %p413 = pneg %p88
        $region50: #{tpu_custom_call.1} parent=43 // pred_check_branch
          %415 = sbr.rel (%p413) target = $region52
        $region51: #{tpu_custom_call.1} parent=43 // pred_region
          %s416 = sand.u32 %s28, 1
          %s417 = scalar_lea.sflag [#allocation8], %s416
          %s418 = sand.u32 %s78, 1
          %s419 = smul.addr %s418, 8
          %s420 = scalar_lea.vmem [#allocation7], %s419
          %s422 = ssub.s32 128, 128
          %423 = vsyncadd %s417, %s422
          %s424 = smul.addr %s35, 128
          %s425 = scalar_lea.hbm %s1, %s424
          %s427 = sshll.u32 %s420, 4
          %s428 = int_to_ptr.vmem [resolvable:$true] %s427
          %430 = dma.hbm_to_vmem [thread:$0]  %s425, 128, %s428, %s417
        $region52: #{tpu_custom_call.1} parent=43 // pred_fallthru
          _
        // Predicated region
        $region53: #{tpu_custom_call.1} parent=43 // pred_check
          %p431 = pneg %p114
        $region54: #{tpu_custom_call.1} parent=43 // pred_check_branch
          %433 = sbr.rel (%p431) target = $region56
        $region55: #{tpu_custom_call.1} parent=43 // pred_region
          %s434 = sand.u32 %s28, 1
          %s435 = scalar_lea.sflag [#allocation8], %s434
          %s436 = sand.u32 %s104, 1
          %s437 = smul.addr %s436, 64
          %s438 = scalar_lea.vmem [#allocation9], %s437
          %s439 = smul.u32 16, %s36
          %s441 = ssub.s32 1024, 1024
          %442 = vsyncadd %s435, %s441
          %s443 = smul.addr %s439, 64
          %s444 = scalar_lea.hbm %s2, %s443
          %s445 = sshll.u32 %s438, 4
          %s446 = int_to_ptr.vmem [resolvable:$true] %s445
          %451 = dma.hbm_to_vmem [thread:$0]  %s444, 1024, %s446, %s435, 64, 64, 4
        $region56: #{tpu_custom_call.1} parent=43 // pred_fallthru
          _
      $region44: #{tpu_custom_call.1} parent=5 // pred_fallthru
        _
      %p452 = scmp.le.s32.totalorder 1, %s28
      %p453 = scmp.lt.s32.totalorder %s28, 5
      %p454 = pnand %p452, %p453
      %p455 = pneg %p454
      // Predicated region
      $region57: #{tpu_custom_call.1} parent=5 // pred_check
        _
      $region58: #{tpu_custom_call.1} parent=5 // pred_check_branch
        %457 = sbr.rel (%p454) target = $region60
      $region59: #{tpu_custom_call.1} parent=5 // pred_region
        %s458 = ssub.s32 %s28, 1
        %s459 = sand.u32 %s55, 1
        %s460 = scalar_lea.sflag [#allocation5], %s459
        %s461 = sand.u32 %s55, 1
        %s462 = smul.addr %s461, 4
        %s463 = scalar_lea.vmem [#allocation4], %s462
        // Predicated region
        $region61: #{tpu_custom_call.1} parent=59 // pred_check
          %p464 = pneg %p68
        $region62: #{tpu_custom_call.1} parent=59 // pred_check_branch
          %466 = sbr.rel (%p464) target = $region64
        $region63: #{tpu_custom_call.1} parent=59 // pred_region
          %467 = dma.done %s460, 64
        $region64: #{tpu_custom_call.1} parent=59 // pred_fallthru
          _
        %s468 = sand.u32 %s33, 1
        %s469 = scalar_lea.sflag [#allocation8], %s468
        %s470 = sand.u32 %s81, 1
        %s471 = smul.addr %s470, 8
        %s472 = scalar_lea.vmem [#allocation7], %s471
        // Predicated region
        $region65: #{tpu_custom_call.1} parent=59 // pred_check
          %p473 = pneg %p94
        $region66: #{tpu_custom_call.1} parent=59 // pred_check_branch
          %475 = sbr.rel (%p473) target = $region68
        $region67: #{tpu_custom_call.1} parent=59 // pred_region
          %476 = dma.done %s469, 128
        $region68: #{tpu_custom_call.1} parent=59 // pred_fallthru
          _
        %s477 = sand.u32 %s33, 1
        %s478 = scalar_lea.sflag [#allocation8], %s477
        %s479 = sand.u32 %s107, 1
        %s480 = smul.addr %s479, 64
        %s481 = scalar_lea.vmem [#allocation9], %s480
        // Predicated region
        $region69: #{tpu_custom_call.1} parent=59 // pred_check
          %p482 = pneg %p120
        $region70: #{tpu_custom_call.1} parent=59 // pred_check_branch
          %484 = sbr.rel (%p482) target = $region72
        $region71: #{tpu_custom_call.1} parent=59 // pred_region
          %485 = dma.done %s478, 1024
        $region72: #{tpu_custom_call.1} parent=59 // pred_fallthru
          _
        // Predicated region
        $region73: #{tpu_custom_call.1} parent=59 // pred_check
          %p486 = pneg %p141
        $region74: #{tpu_custom_call.1} parent=59 // pred_check_branch
          %488 = sbr.rel (%p486) target = $region76
        $region75: #{tpu_custom_call.1} parent=59 // pred_region
          %489 = dma.done [#allocation11], 1024
        $region76: #{tpu_custom_call.1} parent=59 // pred_fallthru
          _
        // Predicated region
        $region77: #{tpu_custom_call.1} parent=59 // pred_check
          %p490 = pneg %p162
        $region78: #{tpu_custom_call.1} parent=59 // pred_check_branch
          %492 = sbr.rel (%p490) target = $region80
        $region79: #{tpu_custom_call.1} parent=59 // pred_region
          %493 = dma.done [#allocation11], 1024
        $region80: #{tpu_custom_call.1} parent=59 // pred_fallthru
          _
        // Predicated region
        $region81: #{tpu_custom_call.1} parent=59 // pred_check
          %p494 = pneg %p183
        $region82: #{tpu_custom_call.1} parent=59 // pred_check_branch
          %496 = sbr.rel (%p494) target = $region84
        $region83: #{tpu_custom_call.1} parent=59 // pred_region
          %497 = dma.done [#allocation14], 1024
        $region84: #{tpu_custom_call.1} parent=59 // pred_fallthru
          _
        // Predicated region
        $region85: #{tpu_custom_call.1} parent=59 // pred_check
          %p498 = pneg %p204
        $region86: #{tpu_custom_call.1} parent=59 // pred_check_branch
          %500 = sbr.rel (%p498) target = $region88
        $region87: #{tpu_custom_call.1} parent=59 // pred_region
          %501 = dma.done [#allocation14], 1024
        $region88: #{tpu_custom_call.1} parent=59 // pred_fallthru
          _
        // Predicated region
        $region89: #{tpu_custom_call.1} parent=59 // pred_check
          %p502 = pneg %p225
        $region90: #{tpu_custom_call.1} parent=59 // pred_check_branch
          %504 = sbr.rel (%p502) target = $region92
        $region91: #{tpu_custom_call.1} parent=59 // pred_region
          %505 = dma.done [#allocation17], 2048
        $region92: #{tpu_custom_call.1} parent=59 // pred_fallthru
          _
        // Predicated region
        $region93: #{tpu_custom_call.1} parent=59 // pred_check
          %p506 = pneg %p246
        $region94: #{tpu_custom_call.1} parent=59 // pred_check_branch
          %508 = sbr.rel (%p506) target = $region96
        $region95: #{tpu_custom_call.1} parent=59 // pred_region
          %509 = dma.done [#allocation17], 256
        $region96: #{tpu_custom_call.1} parent=59 // pred_fallthru
          _
        %s510 = sand.u32 %s55, 1
        %s511 = scalar_lea.sflag [#allocation5], %s510
        %s512 = sand.u32 %s55, 1
        %s513 = smul.addr %s512, 4
        %s514 = scalar_lea.vmem [#allocation4], %s513
        %p515 = pneg %p68
        %p516 = pneg %p65
        %s517 = sand.u32 %s33, 1
        %s518 = scalar_lea.sflag [#allocation8], %s517
        %s519 = sand.u32 %s81, 1
        %s520 = smul.addr %s519, 8
        %s521 = scalar_lea.vmem [#allocation7], %s520
        %p522 = pneg %p94
        %p523 = pneg %p91
        %s524 = sand.u32 %s33, 1
        %s525 = scalar_lea.sflag [#allocation8], %s524
        %s526 = sand.u32 %s107, 1
        %s527 = smul.addr %s526, 64
        %s528 = scalar_lea.vmem [#allocation9], %s527
        %p529 = pneg %p120
        %p530 = pneg %p117
        %p531 = pneg %p141
        %p532 = pneg %p138
        %p533 = pneg %p162
        %p534 = pneg %p159
        %p535 = pneg %p183
        %p536 = pneg %p180
        %p537 = pneg %p204
        %p538 = pneg %p201
        %p539 = pneg %p225
        %p540 = pneg %p222
        %p541 = pneg %p246
        %p542 = pneg %p243
        %p543 = pneg %p267
        %p544 = pneg %p264
        %p545 = pneg %p293
        %p546 = pneg %p290
        %s547 = sand.u32 %s280, 1
        %s548 = scalar_lea.sflag [#allocation6], %s547
        %s549 = sand.u32 %s280, 1
        %s550 = smul.addr %s549, 8
        %s551 = scalar_lea.vmem [#allocation19], %s550
        %s552 = smul.u32 16, %s38
        %p554 = scmp.eq.s32.totalorder %s38, 0
        // Predicated region
        $region97: #{tpu_custom_call.1} parent=59 // pred_check
          %p555 = pneg %p554
        $region98: #{tpu_custom_call.1} parent=59 // pred_check_branch
          %557 = sbr.rel (%p555) target = $region100
        $region99: #{tpu_custom_call.1} parent=59 // pred_region
          %558 = vst [vmem:[#allocation2] sm:$0xff] 0.0
          %vm559 = vcmask 7168
          %560 = vst.msk [vmem:[#allocation3] sm:$0xff] %vm559, 0.0
        $region100: #{tpu_custom_call.1} parent=59 // pred_fallthru
          _
        %v561 = vld [vmem:[%s463] sm:$0xf]
        %v562 = vunpack.c.l.bf16 %v561
        %v563 = vld [vmem:[#allocation3] sm:$0xff]
        %v564 = vmul.f32 %v562, %v562
        %565 = vadd.xlane.f32.xlu0 %v564
        %v566 = vpop.xlane.xlu0 %565
        %v567 = vadd.f32 %v563, %v566
        %vm568 = vcmask 7168
        %569 = vst.msk [vmem:[#allocation3] sm:$0xff] %vm568, %v567
        %v570 = vld [vmem:[#allocation2] sm:$0xff]
        %v571 = vld [vmem:[%s481] sm:$0xf]
        %v572 = vld [vmem:[%s481 + $0x4] sm:$0xf]
        %v573 = vld [vmem:[%s481 + $0x8] sm:$0xf]
        %v574 = vld [vmem:[%s481 + $0xc] sm:$0xf]
        %v575 = vld [vmem:[%s481 + $0x10] sm:$0xf]
        %v576 = vld [vmem:[%s481 + $0x14] sm:$0xf]
        %v577 = vld [vmem:[%s481 + $0x18] sm:$0xf]
        %v578 = vld [vmem:[%s481 + $0x1c] sm:$0xf]
        %v579 = vld [vmem:[%s481 + $0x20] sm:$0xf]
        %v580 = vld [vmem:[%s481 + $0x24] sm:$0xf]
        %v581 = vld [vmem:[%s481 + $0x28] sm:$0xf]
        %v582 = vld [vmem:[%s481 + $0x2c] sm:$0xf]
        %v583 = vld [vmem:[%s481 + $0x30] sm:$0xf]
        %v584 = vld [vmem:[%s481 + $0x34] sm:$0xf]
        %v585 = vld [vmem:[%s481 + $0x38] sm:$0xf]
        %v586 = vld [vmem:[%s481 + $0x3c] sm:$0xf]
        %v603 = vunpack.c.l.b16 %v571
        %v604 = vunpack.c.l.b16 %v572
        %v605 = vunpack.c.l.b16 %v573
        %v606 = vunpack.c.l.b16 %v574
        %v607 = vunpack.c.l.b16 %v575
        %v608 = vunpack.c.l.b16 %v576
        %v609 = vunpack.c.l.b16 %v577
        %v610 = vunpack.c.l.b16 %v578
        %v611 = vunpack.c.l.b16 %v579
        %v612 = vunpack.c.l.b16 %v580
        %v613 = vunpack.c.l.b16 %v581
        %v614 = vunpack.c.l.b16 %v582
        %v615 = vunpack.c.l.b16 %v583
        %v616 = vunpack.c.l.b16 %v584
        %v617 = vunpack.c.l.b16 %v585
        %v618 = vunpack.c.l.b16 %v586
        %v619 = vpack.c.b16 %v604, %v603
        %v620 = vpack.c.b16 %v606, %v605
        %v621 = vpack.c.b16 %v608, %v607
        %v622 = vpack.c.b16 %v610, %v609
        %v623 = vpack.c.b16 %v612, %v611
        %v624 = vpack.c.b16 %v614, %v613
        %v625 = vpack.c.b16 %v616, %v615
        %v626 = vpack.c.b16 %v618, %v617
        %635 = vmatprep.subr.bf16.mxu0 0
        %636 = vmatpush1.bf16.msra.mxu0 %v626
        %637 = vmatprep.subr.bf16.mxu0 0
        %638 = vmatpush1.bf16.msra.mxu0 %v625
        %639 = vmatprep.subr.bf16.mxu0 0
        %640 = vmatpush1.bf16.msra.mxu0 %v624
        %641 = vmatprep.subr.bf16.mxu0 0
        %642 = vmatpush1.bf16.msra.mxu0 %v623
        %643 = vmatprep.subr.bf16.mxu0 0
        %644 = vmatpush1.bf16.msra.mxu0 %v622
        %645 = vmatprep.subr.bf16.mxu0 0
        %646 = vmatpush1.bf16.msra.mxu0 %v621
        %647 = vmatprep.subr.bf16.mxu0 0
        %648 = vmatpush1.bf16.msra.mxu0 %v620
        %649 = vmatprep.subr.bf16.mxu0 0
        %650 = vmatpush1.bf16.msra.mxu0 %v619
        %651 = vmatprep.subr.bf16.mxu0 0
        %652 = vmatpush2.bf16.msra.mxu0 0
        %653 = vmatprep.subr.bf16.mxu0 0
        %654 = vmatpush2.bf16.msra.mxu0 0
        %655 = vmatprep.subr.bf16.mxu0 0
        %656 = vmatpush2.bf16.msra.mxu0 0
        %657 = vmatprep.subr.bf16.mxu0 0
        %658 = vmatpush2.bf16.msra.mxu0 0
        %659 = vmatprep.subr.bf16.mxu0 0
        %660 = vmatpush2.bf16.msra.mxu0 0
        %661 = vmatprep.subr.bf16.mxu0 0
        %662 = vmatpush2.bf16.msra.mxu0 0
        %663 = vmatprep.subr.bf16.mxu0 0
        %664 = vmatpush2.bf16.msra.mxu0 0
        %665 = vmatprep.subr.bf16.mxu0 0
        %666 = vmatpush2.bf16.msra.mxu0 0
        %667 = vmatprep.mubr.bf16.mxu0 0
        %668 = vmatmul.mubr.bf16.gmra.mxu0 %v561
        %v669 = vpop.f32.mrf.mxu0
        %v670 = vadd.f32 0.0, %v669
        %v671 = vpop.f32.mrf.mxu0
        %v672 = vpop.f32.mrf.mxu0
        %v673 = vpop.f32.mrf.mxu0
        %674 = vdwg.mxu0
        %v675 = vadd.f32 %v570, %v670
        %676 = vst [vmem:[#allocation2] sm:$0xff] %v675
        %p677 = scmp.eq.s32.totalorder %s38, 1
        // Predicated region
        $region101: #{tpu_custom_call.1} parent=59 // pred_check
          %p678 = pneg %p677
        $region102: #{tpu_custom_call.1} parent=59 // pred_check_branch
          %680 = sbr.rel (%p678) target = $region104
        $region103: #{tpu_custom_call.1} parent=59 // pred_region
          %v681 = vld [vmem:[%s472] sm:$0xff]
          %v682 = vld [vmem:[#allocation3] sm:$0xff]
          %v683 = vadd.f32 %v682, 1e-12
          %v684 = vrsqrt.pop %v683
          %v685 = vld [vmem:[#allocation18] sm:$0x1]
          %v686 = vld [vmem:[#allocation18 + $0x1] sm:$0x1]
          %v687 = vld [vmem:[#allocation18 + $0x2] sm:$0x1]
          %v688 = vld [vmem:[#allocation2] sm:$0xff]
          %690 = vset.pattern.permute.xlu0 0
          %691 = vperm.xlu0 %690, %v684
          %v692 = vpop.permute.xlu0 %691
          %v694 = vmul.f32 %v688, %v692
          %v695 = vlaneseq
          %v696 = vshrl.u32 %v695, 7
          %v697 = vsub.s32 0, %v696
          %v698 = vrot.slane %v685, %v697
          %v699 = vadd.f32 %v694, %v698
          %v700 = vxor.u32 %v699, 2147483648
          %v701 = vmul.f32 %v700, 1.442695
          %v702 = vpow.pop %v701
          %v703 = vadd.f32 %v702, 1.0
          %v704 = vrcp.pop %v703
          %v705 = vmul.f32 1.0, %v704
          %v706 = vmul.f32 %v699, %v705
          %707 = vadd.xlane.f32.xlu0 %v706
          %v708 = vpop.xlane.xlu0 %707
          %v709 = vrcp.pop 128.0
          %v710 = vmul.f32 %v708, %v709
          %v711 = vmul.f32 %v706, %v706
          %712 = vadd.xlane.f32.xlu0 %v711
          %v713 = vpop.xlane.xlu0 %712
          %v714 = vmul.f32 %v713, %v709
          %v715 = vmul.f32 %v710, %v710
          %v716 = vsub.f32 %v714, %v715
          %v717 = vsub.f32 %v706, %v710
          %v718 = vadd.f32 %v716, 0.1
          %v719 = vrsqrt.pop %v718
          %v720 = vmul.f32 %v717, %v719
          %v721 = vlaneseq
          %v722 = vshrl.u32 %v721, 7
          %v723 = vsub.s32 0, %v722
          %v724 = vrot.slane %v686, %v723
          %v725 = vmul.f32 %v720, %v724
          %v726 = vlaneseq
          %v727 = vshrl.u32 %v726, 7
          %v728 = vsub.s32 0, %v727
          %v729 = vrot.slane %v687, %v728
          %v730 = vadd.f32 %v725, %v729
          %v731 = vld [vmem:[#allocation18 + $0x3] sm:$0x1]
          %v732 = vld [vmem:[#allocation18 + $0x4] sm:$0x1]
          %v733 = vld [vmem:[#allocation18 + $0x5] sm:$0x1]
          %v734 = vpack.c.bf16 %v730, %v730
          %v735 = vld [vmem:[#allocation10] sm:$0xf]
          %v736 = vld [vmem:[#allocation10 + $0x4] sm:$0xf]
          %v737 = vld [vmem:[#allocation10 + $0x8] sm:$0xf]
          %v738 = vld [vmem:[#allocation10 + $0xc] sm:$0xf]
          %v739 = vld [vmem:[#allocation10 + $0x10] sm:$0xf]
          %v740 = vld [vmem:[#allocation10 + $0x14] sm:$0xf]
          %v741 = vld [vmem:[#allocation10 + $0x18] sm:$0xf]
          %v742 = vld [vmem:[#allocation10 + $0x1c] sm:$0xf]
          %v743 = vld [vmem:[#allocation10 + $0x20] sm:$0xf]
          %v744 = vld [vmem:[#allocation10 + $0x24] sm:$0xf]
          %v745 = vld [vmem:[#allocation10 + $0x28] sm:$0xf]
          %v746 = vld [vmem:[#allocation10 + $0x2c] sm:$0xf]
          %v747 = vld [vmem:[#allocation10 + $0x30] sm:$0xf]
          %v748 = vld [vmem:[#allocation10 + $0x34] sm:$0xf]
          %v749 = vld [vmem:[#allocation10 + $0x38] sm:$0xf]
          %v750 = vld [vmem:[#allocation10 + $0x3c] sm:$0xf]
          %v751 = vlaneseq
          %v752 = vshrl.u32 %v751, 7
          %v753 = vsub.s32 0, %v752
          %v754 = vrot.slane %v731, %v753
          %v771 = vunpack.c.l.b16 %v735
          %v772 = vunpack.c.l.b16 %v736
          %v773 = vunpack.c.l.b16 %v737
          %v774 = vunpack.c.l.b16 %v738
          %v775 = vunpack.c.l.b16 %v739
          %v776 = vunpack.c.l.b16 %v740
          %v777 = vunpack.c.l.b16 %v741
          %v778 = vunpack.c.l.b16 %v742
          %v779 = vunpack.c.l.b16 %v743
          %v780 = vunpack.c.l.b16 %v744
          %v781 = vunpack.c.l.b16 %v745
          %v782 = vunpack.c.l.b16 %v746
          %v783 = vunpack.c.l.b16 %v747
          %v784 = vunpack.c.l.b16 %v748
          %v785 = vunpack.c.l.b16 %v749
          %v786 = vunpack.c.l.b16 %v750
          %v787 = vpack.c.b16 %v772, %v771
          %v788 = vpack.c.b16 %v774, %v773
          %v789 = vpack.c.b16 %v776, %v775
          %v790 = vpack.c.b16 %v778, %v777
          %v791 = vpack.c.b16 %v780, %v779
          %v792 = vpack.c.b16 %v782, %v781
          %v793 = vpack.c.b16 %v784, %v783
          %v794 = vpack.c.b16 %v786, %v785
          %803 = vmatprep.subr.bf16.mxu0 0
          %804 = vmatpush1.bf16.msra.mxu0 %v794
          %805 = vmatprep.subr.bf16.mxu0 0
          %806 = vmatpush1.bf16.msra.mxu0 %v793
          %807 = vmatprep.subr.bf16.mxu0 0
          %808 = vmatpush1.bf16.msra.mxu0 %v792
          %809 = vmatprep.subr.bf16.mxu0 0
          %810 = vmatpush1.bf16.msra.mxu0 %v791
          %811 = vmatprep.subr.bf16.mxu0 0
          %812 = vmatpush1.bf16.msra.mxu0 %v790
          %813 = vmatprep.subr.bf16.mxu0 0
          %814 = vmatpush1.bf16.msra.mxu0 %v789
          %815 = vmatprep.subr.bf16.mxu0 0
          %816 = vmatpush1.bf16.msra.mxu0 %v788
          %817 = vmatprep.subr.bf16.mxu0 0
          %818 = vmatpush1.bf16.msra.mxu0 %v787
          %819 = vmatprep.subr.bf16.mxu0 0
          %820 = vmatpush2.bf16.msra.mxu0 0
          %821 = vmatprep.subr.bf16.mxu0 0
          %822 = vmatpush2.bf16.msra.mxu0 0
          %823 = vmatprep.subr.bf16.mxu0 0
          %824 = vmatpush2.bf16.msra.mxu0 0
          %825 = vmatprep.subr.bf16.mxu0 0
          %826 = vmatpush2.bf16.msra.mxu0 0
          %827 = vmatprep.subr.bf16.mxu0 0
          %828 = vmatpush2.bf16.msra.mxu0 0
          %829 = vmatprep.subr.bf16.mxu0 0
          %830 = vmatpush2.bf16.msra.mxu0 0
          %831 = vmatprep.subr.bf16.mxu0 0
          %832 = vmatpush2.bf16.msra.mxu0 0
          %833 = vmatprep.subr.bf16.mxu0 0
          %834 = vmatpush2.bf16.msra.mxu0 0
          %835 = vmatprep.mubr.bf16.mxu0 0
          %836 = vmatmul.mubr.bf16.gmra.mxu0 %v734
          %v837 = vpop.f32.mrf.mxu0
          %v838 = vadd.f32 %v754, %v837
          %v839 = vpop.f32.mrf.mxu0
          %v840 = vpop.f32.mrf.mxu0
          %v841 = vpop.f32.mrf.mxu0
          %842 = vdwg.mxu0
          %v843 = vadd.f32 %v838, %v730
          %v844 = vxor.u32 %v843, 2147483648
          %v845 = vmul.f32 %v844, 1.442695
          %v846 = vpow.pop %v845
          %v847 = vadd.f32 %v846, 1.0
          %v848 = vrcp.pop %v847
          %v849 = vmul.f32 1.0, %v848
          %v850 = vmul.f32 %v843, %v849
          %851 = vadd.xlane.f32.xlu0 %v850
          %v852 = vpop.xlane.xlu0 %851
          %v853 = vmul.f32 %v852, %v709
          %v854 = vmul.f32 %v850, %v850
          %855 = vadd.xlane.f32.xlu0 %v854
          %v856 = vpop.xlane.xlu0 %855
          %v857 = vmul.f32 %v856, %v709
          %v858 = vmul.f32 %v853, %v853
          %v859 = vsub.f32 %v857, %v858
          %v860 = vsub.f32 %v850, %v853
          %v861 = vadd.f32 %v859, 0.1
          %v862 = vrsqrt.pop %v861
          %v863 = vmul.f32 %v860, %v862
          %v864 = vlaneseq
          %v865 = vshrl.u32 %v864, 7
          %v866 = vsub.s32 0, %v865
          %v867 = vrot.slane %v732, %v866
          %v868 = vmul.f32 %v863, %v867
          %v869 = vlaneseq
          %v870 = vshrl.u32 %v869, 7
          %v871 = vsub.s32 0, %v870
          %v872 = vrot.slane %v733, %v871
          %v873 = vadd.f32 %v868, %v872
          %v874 = vadd.f32 %v730, %v873
          %v875 = vld [vmem:[#allocation18 + $0x6] sm:$0x1]
          %v876 = vld [vmem:[#allocation18 + $0x7] sm:$0x1]
          %v877 = vld [vmem:[#allocation18 + $0x8] sm:$0x1]
          %v878 = vpack.c.bf16 %v873, %v873
          %v879 = vld [vmem:[#allocation12] sm:$0xf]
          %v880 = vld [vmem:[#allocation12 + $0x4] sm:$0xf]
          %v881 = vld [vmem:[#allocation12 + $0x8] sm:$0xf]
          %v882 = vld [vmem:[#allocation12 + $0xc] sm:$0xf]
          %v883 = vld [vmem:[#allocation12 + $0x10] sm:$0xf]
          %v884 = vld [vmem:[#allocation12 + $0x14] sm:$0xf]
          %v885 = vld [vmem:[#allocation12 + $0x18] sm:$0xf]
          %v886 = vld [vmem:[#allocation12 + $0x1c] sm:$0xf]
          %v887 = vld [vmem:[#allocation12 + $0x20] sm:$0xf]
          %v888 = vld [vmem:[#allocation12 + $0x24] sm:$0xf]
          %v889 = vld [vmem:[#allocation12 + $0x28] sm:$0xf]
          %v890 = vld [vmem:[#allocation12 + $0x2c] sm:$0xf]
          %v891 = vld [vmem:[#allocation12 + $0x30] sm:$0xf]
          %v892 = vld [vmem:[#allocation12 + $0x34] sm:$0xf]
          %v893 = vld [vmem:[#allocation12 + $0x38] sm:$0xf]
          %v894 = vld [vmem:[#allocation12 + $0x3c] sm:$0xf]
          %v895 = vlaneseq
          %v896 = vshrl.u32 %v895, 7
          %v897 = vsub.s32 0, %v896
          %v898 = vrot.slane %v875, %v897
          %v915 = vunpack.c.l.b16 %v879
          %v916 = vunpack.c.l.b16 %v880
          %v917 = vunpack.c.l.b16 %v881
          %v918 = vunpack.c.l.b16 %v882
          %v919 = vunpack.c.l.b16 %v883
          %v920 = vunpack.c.l.b16 %v884
          %v921 = vunpack.c.l.b16 %v885
          %v922 = vunpack.c.l.b16 %v886
          %v923 = vunpack.c.l.b16 %v887
          %v924 = vunpack.c.l.b16 %v888
          %v925 = vunpack.c.l.b16 %v889
          %v926 = vunpack.c.l.b16 %v890
          %v927 = vunpack.c.l.b16 %v891
          %v928 = vunpack.c.l.b16 %v892
          %v929 = vunpack.c.l.b16 %v893
          %v930 = vunpack.c.l.b16 %v894
          %v931 = vpack.c.b16 %v916, %v915
          %v932 = vpack.c.b16 %v918, %v917
          %v933 = vpack.c.b16 %v920, %v919
          %v934 = vpack.c.b16 %v922, %v921
          %v935 = vpack.c.b16 %v924, %v923
          %v936 = vpack.c.b16 %v926, %v925
          %v937 = vpack.c.b16 %v928, %v927
          %v938 = vpack.c.b16 %v930, %v929
          %947 = vmatprep.subr.bf16.mxu0 0
          %948 = vmatpush1.bf16.msra.mxu0 %v938
          %949 = vmatprep.subr.bf16.mxu0 0
          %950 = vmatpush1.bf16.msra.mxu0 %v937
          %951 = vmatprep.subr.bf16.mxu0 0
          %952 = vmatpush1.bf16.msra.mxu0 %v936
          %953 = vmatprep.subr.bf16.mxu0 0
          %954 = vmatpush1.bf16.msra.mxu0 %v935
          %955 = vmatprep.subr.bf16.mxu0 0
          %956 = vmatpush1.bf16.msra.mxu0 %v934
          %957 = vmatprep.subr.bf16.mxu0 0
          %958 = vmatpush1.bf16.msra.mxu0 %v933
          %959 = vmatprep.subr.bf16.mxu0 0
          %960 = vmatpush1.bf16.msra.mxu0 %v932
          %961 = vmatprep.subr.bf16.mxu0 0
          %962 = vmatpush1.bf16.msra.mxu0 %v931
          %963 = vmatprep.subr.bf16.mxu0 0
          %964 = vmatpush2.bf16.msra.mxu0 0
          %965 = vmatprep.subr.bf16.mxu0 0
          %966 = vmatpush2.bf16.msra.mxu0 0
          %967 = vmatprep.subr.bf16.mxu0 0
          %968 = vmatpush2.bf16.msra.mxu0 0
          %969 = vmatprep.subr.bf16.mxu0 0
          %970 = vmatpush2.bf16.msra.mxu0 0
          %971 = vmatprep.subr.bf16.mxu0 0
          %972 = vmatpush2.bf16.msra.mxu0 0
          %973 = vmatprep.subr.bf16.mxu0 0
          %974 = vmatpush2.bf16.msra.mxu0 0
          %975 = vmatprep.subr.bf16.mxu0 0
          %976 = vmatpush2.bf16.msra.mxu0 0
          %977 = vmatprep.subr.bf16.mxu0 0
          %978 = vmatpush2.bf16.msra.mxu0 0
          %979 = vmatprep.mubr.bf16.mxu0 0
          %980 = vmatmul.mubr.bf16.gmra.mxu0 %v878
          %v981 = vpop.f32.mrf.mxu0
          %v982 = vadd.f32 %v898, %v981
          %v983 = vpop.f32.mrf.mxu0
          %v984 = vpop.f32.mrf.mxu0
          %v985 = vpop.f32.mrf.mxu0
          %986 = vdwg.mxu0
          %v987 = vadd.f32 %v982, %v874
          %v988 = vxor.u32 %v987, 2147483648
          %v989 = vmul.f32 %v988, 1.442695
          %v990 = vpow.pop %v989
          %v991 = vadd.f32 %v990, 1.0
          %v992 = vrcp.pop %v991
          %v993 = vmul.f32 1.0, %v992
          %v994 = vmul.f32 %v987, %v993
          %995 = vadd.xlane.f32.xlu0 %v994
          %v996 = vpop.xlane.xlu0 %995
          %v997 = vmul.f32 %v996, %v709
          %v998 = vmul.f32 %v994, %v994
          %999 = vadd.xlane.f32.xlu0 %v998
          %v1000 = vpop.xlane.xlu0 %999
          %v1001 = vmul.f32 %v1000, %v709
          %v1002 = vmul.f32 %v997, %v997
          %v1003 = vsub.f32 %v1001, %v1002
          %v1004 = vsub.f32 %v994, %v997
          %v1005 = vadd.f32 %v1003, 0.1
          %v1006 = vrsqrt.pop %v1005
          %v1007 = vmul.f32 %v1004, %v1006
          %v1008 = vlaneseq
          %v1009 = vshrl.u32 %v1008, 7
          %v1010 = vsub.s32 0, %v1009
          %v1011 = vrot.slane %v876, %v1010
          %v1012 = vmul.f32 %v1007, %v1011
          %v1013 = vlaneseq
          %v1014 = vshrl.u32 %v1013, 7
          %v1015 = vsub.s32 0, %v1014
          %v1016 = vrot.slane %v877, %v1015
          %v1017 = vadd.f32 %v1012, %v1016
          %v1018 = vadd.f32 %v874, %v1017
          %v1019 = vld [vmem:[#allocation18 + $0x9] sm:$0x1]
          %v1020 = vld [vmem:[#allocation18 + $0xa] sm:$0x1]
          %v1021 = vld [vmem:[#allocation18 + $0xb] sm:$0x1]
          %v1022 = vpack.c.bf16 %v1017, %v1017
          %v1023 = vld [vmem:[#allocation13] sm:$0xf]
          %v1024 = vld [vmem:[#allocation13 + $0x4] sm:$0xf]
          %v1025 = vld [vmem:[#allocation13 + $0x8] sm:$0xf]
          %v1026 = vld [vmem:[#allocation13 + $0xc] sm:$0xf]
          %v1027 = vld [vmem:[#allocation13 + $0x10] sm:$0xf]
          %v1028 = vld [vmem:[#allocation13 + $0x14] sm:$0xf]
          %v1029 = vld [vmem:[#allocation13 + $0x18] sm:$0xf]
          %v1030 = vld [vmem:[#allocation13 + $0x1c] sm:$0xf]
          %v1031 = vld [vmem:[#allocation13 + $0x20] sm:$0xf]
          %v1032 = vld [vmem:[#allocation13 + $0x24] sm:$0xf]
          %v1033 = vld [vmem:[#allocation13 + $0x28] sm:$0xf]
          %v1034 = vld [vmem:[#allocation13 + $0x2c] sm:$0xf]
          %v1035 = vld [vmem:[#allocation13 + $0x30] sm:$0xf]
          %v1036 = vld [vmem:[#allocation13 + $0x34] sm:$0xf]
          %v1037 = vld [vmem:[#allocation13 + $0x38] sm:$0xf]
          %v1038 = vld [vmem:[#allocation13 + $0x3c] sm:$0xf]
          %v1039 = vlaneseq
          %v1040 = vshrl.u32 %v1039, 7
          %v1041 = vsub.s32 0, %v1040
          %v1042 = vrot.slane %v1019, %v1041
          %v1059 = vunpack.c.l.b16 %v1023
          %v1060 = vunpack.c.l.b16 %v1024
          %v1061 = vunpack.c.l.b16 %v1025
          %v1062 = vunpack.c.l.b16 %v1026
          %v1063 = vunpack.c.l.b16 %v1027
          %v1064 = vunpack.c.l.b16 %v1028
          %v1065 = vunpack.c.l.b16 %v1029
          %v1066 = vunpack.c.l.b16 %v1030
          %v1067 = vunpack.c.l.b16 %v1031
          %v1068 = vunpack.c.l.b16 %v1032
          %v1069 = vunpack.c.l.b16 %v1033
          %v1070 = vunpack.c.l.b16 %v1034
          %v1071 = vunpack.c.l.b16 %v1035
          %v1072 = vunpack.c.l.b16 %v1036
          %v1073 = vunpack.c.l.b16 %v1037
          %v1074 = vunpack.c.l.b16 %v1038
          %v1075 = vpack.c.b16 %v1060, %v1059
          %v1076 = vpack.c.b16 %v1062, %v1061
          %v1077 = vpack.c.b16 %v1064, %v1063
          %v1078 = vpack.c.b16 %v1066, %v1065
          %v1079 = vpack.c.b16 %v1068, %v1067
          %v1080 = vpack.c.b16 %v1070, %v1069
          %v1081 = vpack.c.b16 %v1072, %v1071
          %v1082 = vpack.c.b16 %v1074, %v1073
          %1091 = vmatprep.subr.bf16.mxu0 0
          %1092 = vmatpush1.bf16.msra.mxu0 %v1082
          %1093 = vmatprep.subr.bf16.mxu0 0
          %1094 = vmatpush1.bf16.msra.mxu0 %v1081
          %1095 = vmatprep.subr.bf16.mxu0 0
          %1096 = vmatpush1.bf16.msra.mxu0 %v1080
          %1097 = vmatprep.subr.bf16.mxu0 0
          %1098 = vmatpush1.bf16.msra.mxu0 %v1079
          %1099 = vmatprep.subr.bf16.mxu0 0
          %1100 = vmatpush1.bf16.msra.mxu0 %v1078
          %1101 = vmatprep.subr.bf16.mxu0 0
          %1102 = vmatpush1.bf16.msra.mxu0 %v1077
          %1103 = vmatprep.subr.bf16.mxu0 0
          %1104 = vmatpush1.bf16.msra.mxu0 %v1076
          %1105 = vmatprep.subr.bf16.mxu0 0
          %1106 = vmatpush1.bf16.msra.mxu0 %v1075
          %1107 = vmatprep.subr.bf16.mxu0 0
          %1108 = vmatpush2.bf16.msra.mxu0 0
          %1109 = vmatprep.subr.bf16.mxu0 0
          %1110 = vmatpush2.bf16.msra.mxu0 0
          %1111 = vmatprep.subr.bf16.mxu0 0
          %1112 = vmatpush2.bf16.msra.mxu0 0
          %1113 = vmatprep.subr.bf16.mxu0 0
          %1114 = vmatpush2.bf16.msra.mxu0 0
          %1115 = vmatprep.subr.bf16.mxu0 0
          %1116 = vmatpush2.bf16.msra.mxu0 0
          %1117 = vmatprep.subr.bf16.mxu0 0
          %1118 = vmatpush2.bf16.msra.mxu0 0
          %1119 = vmatprep.subr.bf16.mxu0 0
          %1120 = vmatpush2.bf16.msra.mxu0 0
          %1121 = vmatprep.subr.bf16.mxu0 0
          %1122 = vmatpush2.bf16.msra.mxu0 0
          %1123 = vmatprep.mubr.bf16.mxu0 0
          %1124 = vmatmul.mubr.bf16.gmra.mxu0 %v1022
          %v1125 = vpop.f32.mrf.mxu0
          %v1126 = vadd.f32 %v1042, %v1125
          %v1127 = vpop.f32.mrf.mxu0
          %v1128 = vpop.f32.mrf.mxu0
          %v1129 = vpop.f32.mrf.mxu0
          %1130 = vdwg.mxu0
          %v1131 = vadd.f32 %v1126, %v1018
          %v1132 = vxor.u32 %v1131, 2147483648
          %v1133 = vmul.f32 %v1132, 1.442695
          %v1134 = vpow.pop %v1133
          %v1135 = vadd.f32 %v1134, 1.0
          %v1136 = vrcp.pop %v1135
          %v1137 = vmul.f32 1.0, %v1136
          %v1138 = vmul.f32 %v1131, %v1137
          %1139 = vadd.xlane.f32.xlu0 %v1138
          %v1140 = vpop.xlane.xlu0 %1139
          %v1141 = vmul.f32 %v1140, %v709
          %v1142 = vmul.f32 %v1138, %v1138
          %1143 = vadd.xlane.f32.xlu0 %v1142
          %v1144 = vpop.xlane.xlu0 %1143
          %v1145 = vmul.f32 %v1144, %v709
          %v1146 = vmul.f32 %v1141, %v1141
          %v1147 = vsub.f32 %v1145, %v1146
          %v1148 = vsub.f32 %v1138, %v1141
          %v1149 = vadd.f32 %v1147, 0.1
          %v1150 = vrsqrt.pop %v1149
          %v1151 = vmul.f32 %v1148, %v1150
          %v1152 = vlaneseq
          %v1153 = vshrl.u32 %v1152, 7
          %v1154 = vsub.s32 0, %v1153
          %v1155 = vrot.slane %v1020, %v1154
          %v1156 = vmul.f32 %v1151, %v1155
          %v1157 = vlaneseq
          %v1158 = vshrl.u32 %v1157, 7
          %v1159 = vsub.s32 0, %v1158
          %v1160 = vrot.slane %v1021, %v1159
          %v1161 = vadd.f32 %v1156, %v1160
          %v1162 = vadd.f32 %v1018, %v1161
          %v1163 = vld [vmem:[#allocation18 + $0xc] sm:$0x1]
          %v1164 = vld [vmem:[#allocation18 + $0xd] sm:$0x1]
          %v1165 = vld [vmem:[#allocation18 + $0xe] sm:$0x1]
          %v1166 = vpack.c.bf16 %v1161, %v1161
          %v1167 = vld [vmem:[#allocation15] sm:$0xf]
          %v1168 = vld [vmem:[#allocation15 + $0x4] sm:$0xf]
          %v1169 = vld [vmem:[#allocation15 + $0x8] sm:$0xf]
          %v1170 = vld [vmem:[#allocation15 + $0xc] sm:$0xf]
          %v1171 = vld [vmem:[#allocation15 + $0x10] sm:$0xf]
          %v1172 = vld [vmem:[#allocation15 + $0x14] sm:$0xf]
          %v1173 = vld [vmem:[#allocation15 + $0x18] sm:$0xf]
          %v1174 = vld [vmem:[#allocation15 + $0x1c] sm:$0xf]
          %v1175 = vld [vmem:[#allocation15 + $0x20] sm:$0xf]
          %v1176 = vld [vmem:[#allocation15 + $0x24] sm:$0xf]
          %v1177 = vld [vmem:[#allocation15 + $0x28] sm:$0xf]
          %v1178 = vld [vmem:[#allocation15 + $0x2c] sm:$0xf]
          %v1179 = vld [vmem:[#allocation15 + $0x30] sm:$0xf]
          %v1180 = vld [vmem:[#allocation15 + $0x34] sm:$0xf]
          %v1181 = vld [vmem:[#allocation15 + $0x38] sm:$0xf]
          %v1182 = vld [vmem:[#allocation15 + $0x3c] sm:$0xf]
          %v1183 = vlaneseq
          %v1184 = vshrl.u32 %v1183, 7
          %v1185 = vsub.s32 0, %v1184
          %v1186 = vrot.slane %v1163, %v1185
          %v1203 = vunpack.c.l.b16 %v1167
          %v1204 = vunpack.c.l.b16 %v1168
          %v1205 = vunpack.c.l.b16 %v1169
          %v1206 = vunpack.c.l.b16 %v1170
          %v1207 = vunpack.c.l.b16 %v1171
          %v1208 = vunpack.c.l.b16 %v1172
          %v1209 = vunpack.c.l.b16 %v1173
          %v1210 = vunpack.c.l.b16 %v1174
          %v1211 = vunpack.c.l.b16 %v1175
          %v1212 = vunpack.c.l.b16 %v1176
          %v1213 = vunpack.c.l.b16 %v1177
          %v1214 = vunpack.c.l.b16 %v1178
          %v1215 = vunpack.c.l.b16 %v1179
          %v1216 = vunpack.c.l.b16 %v1180
          %v1217 = vunpack.c.l.b16 %v1181
          %v1218 = vunpack.c.l.b16 %v1182
          %v1219 = vpack.c.b16 %v1204, %v1203
          %v1220 = vpack.c.b16 %v1206, %v1205
          %v1221 = vpack.c.b16 %v1208, %v1207
          %v1222 = vpack.c.b16 %v1210, %v1209
          %v1223 = vpack.c.b16 %v1212, %v1211
          %v1224 = vpack.c.b16 %v1214, %v1213
          %v1225 = vpack.c.b16 %v1216, %v1215
          %v1226 = vpack.c.b16 %v1218, %v1217
          %1235 = vmatprep.subr.bf16.mxu0 0
          %1236 = vmatpush1.bf16.msra.mxu0 %v1226
          %1237 = vmatprep.subr.bf16.mxu0 0
          %1238 = vmatpush1.bf16.msra.mxu0 %v1225
          %1239 = vmatprep.subr.bf16.mxu0 0
          %1240 = vmatpush1.bf16.msra.mxu0 %v1224
          %1241 = vmatprep.subr.bf16.mxu0 0
          %1242 = vmatpush1.bf16.msra.mxu0 %v1223
          %1243 = vmatprep.subr.bf16.mxu0 0
          %1244 = vmatpush1.bf16.msra.mxu0 %v1222
          %1245 = vmatprep.subr.bf16.mxu0 0
          %1246 = vmatpush1.bf16.msra.mxu0 %v1221
          %1247 = vmatprep.subr.bf16.mxu0 0
          %1248 = vmatpush1.bf16.msra.mxu0 %v1220
          %1249 = vmatprep.subr.bf16.mxu0 0
          %1250 = vmatpush1.bf16.msra.mxu0 %v1219
          %1251 = vmatprep.subr.bf16.mxu0 0
          %1252 = vmatpush2.bf16.msra.mxu0 0
          %1253 = vmatprep.subr.bf16.mxu0 0
          %1254 = vmatpush2.bf16.msra.mxu0 0
          %1255 = vmatprep.subr.bf16.mxu0 0
          %1256 = vmatpush2.bf16.msra.mxu0 0
          %1257 = vmatprep.subr.bf16.mxu0 0
          %1258 = vmatpush2.bf16.msra.mxu0 0
          %1259 = vmatprep.subr.bf16.mxu0 0
          %1260 = vmatpush2.bf16.msra.mxu0 0
          %1261 = vmatprep.subr.bf16.mxu0 0
          %1262 = vmatpush2.bf16.msra.mxu0 0
          %1263 = vmatprep.subr.bf16.mxu0 0
          %1264 = vmatpush2.bf16.msra.mxu0 0
          %1265 = vmatprep.subr.bf16.mxu0 0
          %1266 = vmatpush2.bf16.msra.mxu0 0
          %1267 = vmatprep.mubr.bf16.mxu0 0
          %1268 = vmatmul.mubr.bf16.gmra.mxu0 %v1166
          %v1269 = vpop.f32.mrf.mxu0
          %v1270 = vadd.f32 %v1186, %v1269
          %v1271 = vpop.f32.mrf.mxu0
          %v1272 = vpop.f32.mrf.mxu0
          %v1273 = vpop.f32.mrf.mxu0
          %1274 = vdwg.mxu0
          %v1275 = vadd.f32 %v1270, %v1162
          %v1276 = vxor.u32 %v1275, 2147483648
          %v1277 = vmul.f32 %v1276, 1.442695
          %v1278 = vpow.pop %v1277
          %v1279 = vadd.f32 %v1278, 1.0
          %v1280 = vrcp.pop %v1279
          %v1281 = vmul.f32 1.0, %v1280
          %v1282 = vmul.f32 %v1275, %v1281
          %1283 = vadd.xlane.f32.xlu0 %v1282
          %v1284 = vpop.xlane.xlu0 %1283
          %v1285 = vmul.f32 %v1284, %v709
          %v1286 = vmul.f32 %v1282, %v1282
          %1287 = vadd.xlane.f32.xlu0 %v1286
          %v1288 = vpop.xlane.xlu0 %1287
          %v1289 = vmul.f32 %v1288, %v709
          %v1290 = vmul.f32 %v1285, %v1285
          %v1291 = vsub.f32 %v1289, %v1290
          %v1292 = vsub.f32 %v1282, %v1285
          %v1293 = vadd.f32 %v1291, 0.1
          %v1294 = vrsqrt.pop %v1293
          %v1295 = vmul.f32 %v1292, %v1294
          %v1296 = vlaneseq
          %v1297 = vshrl.u32 %v1296, 7
          %v1298 = vsub.s32 0, %v1297
          %v1299 = vrot.slane %v1164, %v1298
          %v1300 = vmul.f32 %v1295, %v1299
          %v1301 = vlaneseq
          %v1302 = vshrl.u32 %v1301, 7
          %v1303 = vsub.s32 0, %v1302
          %v1304 = vrot.slane %v1165, %v1303
          %v1305 = vadd.f32 %v1300, %v1304
          %v1306 = vld [vmem:[%s9] sm:$0x3]
          %v1307 = vpack.c.bf16 %v1305, %v1305
          %v1308 = vld [vmem:[#allocation16] sm:$0xff]
          %v1309 = vld [vmem:[#allocation16 + $0x8] sm:$0xff]
          %v1310 = vld [vmem:[#allocation16 + $0x10] sm:$0xff]
          %v1311 = vld [vmem:[#allocation16 + $0x18] sm:$0xff]
          %v1312 = vld [vmem:[#allocation16 + $0x20] sm:$0xff]
          %v1313 = vld [vmem:[#allocation16 + $0x28] sm:$0xff]
          %v1314 = vld [vmem:[#allocation16 + $0x30] sm:$0xff]
          %v1315 = vld [vmem:[#allocation16 + $0x38] sm:$0xff]
          %v1316 = vld [vmem:[#allocation16 + $0x40] sm:$0xff]
          %v1317 = vld [vmem:[#allocation16 + $0x48] sm:$0xff]
          %v1318 = vld [vmem:[#allocation16 + $0x50] sm:$0xff]
          %v1319 = vld [vmem:[#allocation16 + $0x58] sm:$0xff]
          %v1320 = vld [vmem:[#allocation16 + $0x60] sm:$0xff]
          %v1321 = vld [vmem:[#allocation16 + $0x68] sm:$0xff]
          %v1322 = vld [vmem:[#allocation16 + $0x70] sm:$0xff]
          %v1323 = vld [vmem:[#allocation16 + $0x78] sm:$0xff]
          %v1325 = vlaneseq
          %v1326 = vshrl.u32 %v1325, 7
          %v1327 = vsub.s32 0, %v1326
          %v1328 = vrot.slane %v1306, %v1327
          %v1329 = vlaneseq
          %v1330 = vshrl.u32 %v1329, 7
          %v1331 = vsub.s32 1, %v1330
          %v1332 = vrot.slane %v1306, %v1331
          %v1351 = vunpack.c.l.b16 %v1308
          %v1352 = vunpack.c.h.b16 %v1308
          %v1353 = vunpack.c.l.b16 %v1309
          %v1354 = vunpack.c.h.b16 %v1309
          %v1355 = vunpack.c.l.b16 %v1310
          %v1356 = vunpack.c.h.b16 %v1310
          %v1357 = vunpack.c.l.b16 %v1311
          %v1358 = vunpack.c.h.b16 %v1311
          %v1359 = vunpack.c.l.b16 %v1312
          %v1360 = vunpack.c.h.b16 %v1312
          %v1361 = vunpack.c.l.b16 %v1313
          %v1362 = vunpack.c.h.b16 %v1313
          %v1363 = vunpack.c.l.b16 %v1314
          %v1364 = vunpack.c.h.b16 %v1314
          %v1365 = vunpack.c.l.b16 %v1315
          %v1366 = vunpack.c.h.b16 %v1315
          %v1367 = vunpack.c.l.b16 %v1316
          %v1368 = vunpack.c.h.b16 %v1316
          %v1369 = vunpack.c.l.b16 %v1317
          %v1370 = vunpack.c.h.b16 %v1317
          %v1371 = vunpack.c.l.b16 %v1318
          %v1372 = vunpack.c.h.b16 %v1318
          %v1373 = vunpack.c.l.b16 %v1319
          %v1374 = vunpack.c.h.b16 %v1319
          %v1375 = vunpack.c.l.b16 %v1320
          %v1376 = vunpack.c.h.b16 %v1320
          %v1377 = vunpack.c.l.b16 %v1321
          %v1378 = vunpack.c.h.b16 %v1321
          %v1379 = vunpack.c.l.b16 %v1322
          %v1380 = vunpack.c.h.b16 %v1322
          %v1381 = vunpack.c.l.b16 %v1323
          %v1382 = vunpack.c.h.b16 %v1323
          %v1383 = vpack.c.b16 %v1353, %v1351
          %v1384 = vpack.c.b16 %v1354, %v1352
          %v1385 = vpack.c.b16 %v1357, %v1355
          %v1386 = vpack.c.b16 %v1358, %v1356
          %v1387 = vpack.c.b16 %v1361, %v1359
          %v1388 = vpack.c.b16 %v1362, %v1360
          %v1389 = vpack.c.b16 %v1365, %v1363
          %v1390 = vpack.c.b16 %v1366, %v1364
          %v1391 = vpack.c.b16 %v1369, %v1367
          %v1392 = vpack.c.b16 %v1370, %v1368
          %v1393 = vpack.c.b16 %v1373, %v1371
          %v1394 = vpack.c.b16 %v1374, %v1372
          %v1395 = vpack.c.b16 %v1377, %v1375
          %v1396 = vpack.c.b16 %v1378, %v1376
          %v1397 = vpack.c.b16 %v1381, %v1379
          %v1398 = vpack.c.b16 %v1382, %v1380
          %1415 = vmatprep.subr.bf16.mxu0 %v1398
          %1416 = vmatpush1.bf16.msra.mxu0 %v1397
          %1417 = vmatprep.subr.bf16.mxu0 %v1396
          %1418 = vmatpush1.bf16.msra.mxu0 %v1395
          %1419 = vmatprep.subr.bf16.mxu0 %v1394
          %1420 = vmatpush1.bf16.msra.mxu0 %v1393
          %1421 = vmatprep.subr.bf16.mxu0 %v1392
          %1422 = vmatpush1.bf16.msra.mxu0 %v1391
          %1423 = vmatprep.subr.bf16.mxu0 %v1390
          %1424 = vmatpush1.bf16.msra.mxu0 %v1389
          %1425 = vmatprep.subr.bf16.mxu0 %v1388
          %1426 = vmatpush1.bf16.msra.mxu0 %v1387
          %1427 = vmatprep.subr.bf16.mxu0 %v1386
          %1428 = vmatpush1.bf16.msra.mxu0 %v1385
          %1429 = vmatprep.subr.bf16.mxu0 %v1384
          %1430 = vmatpush1.bf16.msra.mxu0 %v1383
          %1431 = vmatprep.subr.bf16.mxu0 0
          %1432 = vmatpush2.bf16.msra.mxu0 0
          %1433 = vmatprep.subr.bf16.mxu0 0
          %1434 = vmatpush2.bf16.msra.mxu0 0
          %1435 = vmatprep.subr.bf16.mxu0 0
          %1436 = vmatpush2.bf16.msra.mxu0 0
          %1437 = vmatprep.subr.bf16.mxu0 0
          %1438 = vmatpush2.bf16.msra.mxu0 0
          %1439 = vmatprep.subr.bf16.mxu0 0
          %1440 = vmatpush2.bf16.msra.mxu0 0
          %1441 = vmatprep.subr.bf16.mxu0 0
          %1442 = vmatpush2.bf16.msra.mxu0 0
          %1443 = vmatprep.subr.bf16.mxu0 0
          %1444 = vmatpush2.bf16.msra.mxu0 0
          %1445 = vmatprep.subr.bf16.mxu0 0
          %1446 = vmatpush2.bf16.msra.mxu0 0
          %1447 = vmatprep.mubr.bf16.mxu0 0
          %1448 = vmatmul.mubr.bf16.gmra.mxu0 %v1307
          %v1449 = vpop.f32.mrf.mxu0
          %v1450 = vadd.f32 %v1328, %v1449
          %v1451 = vpop.f32.mrf.mxu0
          %v1452 = vadd.f32 %v1332, %v1451
          %v1453 = vpop.f32.mrf.mxu0
          %v1454 = vpop.f32.mrf.mxu0
          %1455 = vdwg.mxu0
          %v1456 = vmul.f32 %v681, %v681
          %v1457 = vadd.f32 %v1456, 1.837877
          %v1458 = vmul.f32 %v1457, -0.5
          %v1459 = vadd.f32 %v1458, -1.89712
          %v1460 = vsub.f32 %v681, %v1450
          %v1461 = vadd.f32 %v1452, 1.837877
          %v1462 = vmul.f32 %v1460, %v1460
          %v1463 = vsub.f32 0.0, %v1452
          %v1464 = vmul.f32 %v1463, 1.442695
          %v1465 = vpow.pop %v1464
          %v1466 = vmul.f32 %v1462, %v1465
          %v1467 = vadd.f32 %v1461, %v1466
          %v1468 = vmul.f32 %v1467, -0.5
          %v1469 = vadd.f32 %v1468, -0.2876821
          %v1470 = vmul.f32 %v1456, 4.539993e-05
          %v1471 = vadd.f32 %v1470, 11.837877
          %v1472 = vmul.f32 %v1471, -0.5
          %v1473 = vadd.f32 %v1472, -2.3025851
          %v1474 = vmax.f32 %v1459, %v1469
          %v1475 = vmax.f32 %v1474, %v1473
          %v1476 = vsub.f32 %v1459, %v1475
          %v1477 = vmul.f32 %v1476, 1.442695
          %v1478 = vpow.pop %v1477
          %v1479 = vsub.f32 %v1469, %v1475
          %v1480 = vmul.f32 %v1479, 1.442695
          %v1481 = vpow.pop %v1480
          %v1482 = vadd.f32 %v1478, %v1481
          %v1483 = vsub.f32 %v1473, %v1475
          %v1484 = vmul.f32 %v1483, 1.442695
          %v1485 = vpow.pop %v1484
          %v1486 = vadd.f32 %v1482, %v1485
          %v1487 = vlog2.pop %v1486
          %v1488 = vmul.f32 %v1487, 0.6931472
          %v1489 = vadd.f32 %v1475, %v1488
          %1490 = vst [vmem:[%s551] sm:$0xff] %v1489
        $region104: #{tpu_custom_call.1} parent=59 // pred_fallthru
          _
        %s1491 = sand.u32 %s280, 1
        %s1492 = scalar_lea.sflag [#allocation6], %s1491
        %s1493 = sand.u32 %s280, 1
        %s1494 = smul.addr %s1493, 8
        %s1495 = scalar_lea.vmem [#allocation19], %s1494
        // Predicated region
        $region105: #{tpu_custom_call.1} parent=59 // pred_check
          %p1496 = pneg %p290
        $region106: #{tpu_custom_call.1} parent=59 // pred_check_branch
          %1498 = sbr.rel (%p1496) target = $region108
        $region107: #{tpu_custom_call.1} parent=59 // pred_region
          %s1500 = ssub.s32 128, 128
          %1501 = vsyncadd %s1492, %s1500
          %s1502 = smul.addr %s37, 128
          %s1503 = scalar_lea.hbm %s10, %s1502
          %s1505 = sshll.u32 %s1495, 4
          %s1506 = int_to_ptr.vmem [resolvable:$true] %s1505
          %1508 = dma.vmem_to_hbm [thread:$0]  %s1506, 128, %s1503, %s1492
        $region108: #{tpu_custom_call.1} parent=59 // pred_fallthru
          _
      $region60: #{tpu_custom_call.1} parent=5 // pred_fallthru
        _
      %p1509 = scmp.le.s32.totalorder 2, %s28
      // Predicated region
      $region109: #{tpu_custom_call.1} parent=5 // pred_check
        %p1510 = pneg %p1509
      $region110: #{tpu_custom_call.1} parent=5 // pred_check_branch
        %1512 = sbr.rel (%p1510) target = $region112
      $region111: #{tpu_custom_call.1} parent=5 // pred_region
        %s1513 = ssub.s32 %s28, 2
        // Predicated region
        $region113: #{tpu_custom_call.1} parent=111 // pred_check
          %p1514 = pneg %p296
        $region114: #{tpu_custom_call.1} parent=111 // pred_check_branch
          %1516 = sbr.rel (%p1514) target = $region116
        $region115: #{tpu_custom_call.1} parent=111 // pred_region
          %s1517 = sand.u32 %s281, 1
          %s1518 = scalar_lea.sflag [#allocation6], %s1517
          %s1519 = sand.u32 %s281, 1
          %s1520 = smul.addr %s1519, 8
          %s1521 = scalar_lea.vmem [#allocation19], %s1520
          %1522 = dma.done %s1518, 128
        $region116: #{tpu_custom_call.1} parent=111 // pred_fallthru
          _
      $region112: #{tpu_custom_call.1} parent=5 // pred_fallthru
        _
    $region6: #{tpu_custom_call.1} parent=1 // loop_footer
      %s32 = sadd.s32 1, %s28
    $region7: #{tpu_custom_call.1} parent=1 // loop_footer_branch
      %27 = sbr.rel target = $region3
    $region8: #{tpu_custom_call.1} parent=1 // loop_exit
      _
    %1523 = vsyncpa [#allocation5], 1
    %s1524 = scalar_lea.sflag [#allocation5], 1
    %1525 = vsyncpa %s1524, 1
    %1526 = vsyncpa [#allocation8], 1
    %s1527 = scalar_lea.sflag [#allocation8], 1
    %1528 = vsyncpa %s1527, 1
    %1529 = vsyncpa [#allocation11], 1
    %1530 = vsyncpa [#allocation14], 1
    %1531 = vsyncpa [#allocation17], 1
    %1532 = vsyncpa [#allocation6], 1
    %s1533 = scalar_lea.sflag [#allocation6], 1
    %1534 = vsyncpa %s1533, 1

</llo_original>
